<compile_context>
chip_gen: v5e
topology: v5e:2x2
jax: 0.10.0
libtpu: 0.0.40
codegen_flags: <defaults>
</compile_context>

<pallas_src>
import functools
import math

import jax
import jax.numpy as jnp
from jax import lax
from jax.experimental import pallas as pl
from jax.experimental.pallas import tpu as pltpu


def _mha_fused_kernel(q_ref, k_ref, v_ref, w_qkv_ref, b_qkv_ref, wo_ref, bo_ref,
                      out_ref, attn_ref, *, n_heads, mxu_dtype):
    """One batch element per grid step.

    q_ref/k_ref/v_ref : (S, D)        (batch dim squeezed)
    w_qkv_ref         : (3, D, D)     [Wq (pre-scaled), Wk, Wv], lane-dense
    b_qkv_ref         : (3, 1, D)     fp32 biases (bq pre-scaled)
    wo_ref            : (D, D)        output projection, lane-dense
    bo_ref            : (1, D)        fp32
    out_ref           : (S, D)        lane-dense output tile
    attn_ref          : (H, S, S)     attention weights (fp32)
    """
    S, D = q_ref.shape
    H = n_heads
    dk = D // H

    def mx(x):  # cast to MXU operand dtype (no-op when mxu_dtype == fp32)
        return x.astype(mxu_dtype)

    # --- Lane-dense QKV projections: (S, D) @ (D, D), fp32 MXU accumulation.
    # 1/sqrt(dk) is already folded into W_Q / b_Q on the host.
    q2d = jnp.dot(mx(q_ref[...]), w_qkv_ref[0],
                  preferred_element_type=jnp.float32) + b_qkv_ref[0]
    k2d = jnp.dot(mx(k_ref[...]), w_qkv_ref[1],
                  preferred_element_type=jnp.float32) + b_qkv_ref[1]
    v2d = jnp.dot(mx(v_ref[...]), w_qkv_ref[2],
                  preferred_element_type=jnp.float32) + b_qkv_ref[2]

    # TODO(synk): optional attention mask (masked_fill(mask == 0, -1e9)) not
    # wired up; the module's default forward path uses mask=None.

    # --- Per-head attention; heads sliced along the lane axis (static slices,
    # H is a compile-time constant so this loop fully unrolls).
    ctx_heads = []
    for h in range(H):
        lo = h * dk
        qh = q2d[:, lo:lo + dk]                       # (S, dk) fp32 (pre-scaled)
        kh = k2d[:, lo:lo + dk]
        vh = v2d[:, lo:lo + dk]

        # scores = qh @ kh^T without an explicit transpose (contract on dk).
        s = lax.dot_general(mx(qh), mx(kh), (((1,), (1,)), ((), ())),
                            preferred_element_type=jnp.float32)       # (S, S)

        # Numerically stable softmax along the key axis (fp32).
        m = jnp.max(s, axis=-1, keepdims=True)
        e = jnp.exp(s - m)
        denom = jnp.sum(e, axis=-1, keepdims=True)
        # EUP approximate reciprocal + one Newton step: runs on the (otherwise
        # idle) EUP slot yet stays at fp32-level accuracy for the parity check.
        r = pl.reciprocal(denom, approx=True)
        r = r * (2.0 - denom * r)
        w = e * r                                                       # (S, S)

        attn_ref[h, :, :] = w.astype(attn_ref.dtype)
        ctx_heads.append(jnp.dot(mx(w), mx(vh),
                                 preferred_element_type=jnp.float32))  # (S, dk)

    # --- Head merge along the lane axis + lane-dense output projection.
    ctx = jnp.concatenate(ctx_heads, axis=-1)                          # (S, D)
    out = jnp.dot(mx(ctx), wo_ref[...],
                  preferred_element_type=jnp.float32) + bo_ref[...]
    out_ref[...] = out.astype(out_ref.dtype)


def multi_head_attention(params, Q, K, V, n_heads, *, mxu_dtype=jnp.float32):
    """Fused MHA forward. Q, K, V: (B, S, D).

    Returns (output (B, S, D), attention_weights (B, H, S, S)).
    On v6e/v7x pass mxu_dtype=jnp.bfloat16 for peak MXU rate (fp32 accumulate);
    validate against a bf16-aware tolerance before relying on that path.
    """
    B, S, D = Q.shape
    H = n_heads
    dk = D // H
    scale = 1.0 / math.sqrt(dk)

    # Host-side (one-time, tiny) weight prep:
    #   * fold 1/sqrt(dk) into W_Q / b_Q
    #   * keep weights un-split and lane-dense: (D, D) stored (in, out)
    #   * pre-cast weights to the MXU dtype (no per-step in-kernel casts)
    w_qkv = jnp.stack([params["wq_t"] * scale,
                       params["wk_t"],
                       params["wv_t"]], axis=0).astype(mxu_dtype)      # (3, D, D)
    b_qkv = jnp.stack([params["bq"] * scale,
                       params["bk"],
                       params["bv"]], axis=0).reshape(3, 1, D)          # fp32
    wo = params["wo_t"].astype(mxu_dtype)                               # (D, D)
    bo = params["bo"].reshape(1, D)                                     # fp32

    flops = B * (8 * S * D * D + 4 * S * S * D)
    bytes_accessed = 4 * (3 * B * S * D          # Q, K, V in
                          + 4 * D * D + 4 * D    # weights / biases
                          + B * S * D            # output
                          + B * H * S * S)       # attention weights
    cost = pl.CostEstimate(flops=flops,
                           transcendentals=B * H * S * S,
                           bytes_accessed=bytes_accessed)

    kernel = functools.partial(_mha_fused_kernel, n_heads=n_heads,
                               mxu_dtype=mxu_dtype)

    def make_call(single_buffer_weights):
        def const_spec(shape):
            idx = lambda b: (0,) * len(shape)
            if single_buffer_weights:
                # Weights never change block index across the grid -> single
                # buffer them instead of the default double buffering.
                return pl.BlockSpec(shape, idx, pipeline_mode=pl.Buffered(1))
            return pl.BlockSpec(shape, idx)

        return pl.pallas_call(
            kernel,
            out_shape=(
                jax.ShapeDtypeStruct((B, S, D), Q.dtype),
                jax.ShapeDtypeStruct((B, H, S, S), jnp.float32),
            ),
            grid=(B,),
            in_specs=[
                pl.BlockSpec((pl.Squeezed(), S, D), lambda b: (b, 0, 0)),   # Q
                pl.BlockSpec((pl.Squeezed(), S, D), lambda b: (b, 0, 0)),   # K
                pl.BlockSpec((pl.Squeezed(), S, D), lambda b: (b, 0, 0)),   # V
                const_spec((3, D, D)),                                      # Wqkv
                const_spec((3, 1, D)),                                      # bqkv
                const_spec((D, D)),                                         # Wo
                const_spec((1, D)),                                         # bo
            ],
            out_specs=(
                pl.BlockSpec((pl.Squeezed(), S, D), lambda b: (b, 0, 0)),
                pl.BlockSpec((pl.Squeezed(), H, S, S), lambda b: (b, 0, 0, 0)),
            ),
            compiler_params=pltpu.CompilerParams(
                dimension_semantics=("parallel",),
                vmem_limit_bytes=48 * 1024 * 1024),
            cost_estimate=cost,
        )

    args = (Q, K, V, w_qkv, b_qkv, wo, bo)
    try:
        return make_call(True)(*args)
    except Exception:
        # pipeline_mode=pl.Buffered(1) not supported by this jax version /
        # backend: fall back to default double-buffered weight blocks.
        return make_call(False)(*args)


def init_params(key, d_model):
    """Deterministic init mimicking nn.Linear (uniform +-1/sqrt(fan_in))."""
    bound = 1.0 / math.sqrt(d_model)
    keys = jax.random.split(key, 8)

    def w(k):  # stored already transposed: (in, out)
        return jax.random.uniform(k, (d_model, d_model), jnp.float32, -bound, bound)

    def b(k):
        return jax.random.uniform(k, (d_model,), jnp.float32, -bound, bound)

    return {
        "wq_t": w(keys[0]), "bq": b(keys[1]),
        "wk_t": w(keys[2]), "bk": b(keys[3]),
        "wv_t": w(keys[4]), "bv": b(keys[5]),
        "wo_t": w(keys[6]), "bo": b(keys[7]),
    }


if __name__ == "__main__":
    d_model, n_heads = 32, 4
    batch, seq = 2, 8

    key = jax.random.PRNGKey(0)
    kp, kq, kk, kv = jax.random.split(key, 4)
    params = init_params(kp, d_model)

    Q = jax.random.normal(kq, (batch, seq, d_model), jnp.float32)
    K = jax.random.normal(kk, (batch, seq, d_model), jnp.float32)
    V = jax.random.normal(kv, (batch, seq, d_model), jnp.float32)

    out, attn = multi_head_attention(params, Q, K, V, n_heads)
    jax.block_until_ready(out)
    jax.block_until_ready(attn)

    # sanity check against a pure-JAX fp32 reference
    def ref_forward(params, Q, K, V):
        B, S, D = Q.shape
        dk = D // n_heads
        q = Q.reshape(B * S, D) @ params["wq_t"] + params["bq"]
        k = K.reshape(B * S, D) @ params["wk_t"] + params["bk"]
        v = V.reshape(B * S, D) @ params["wv_t"] + params["bv"]
        q = q.reshape(B, S, n_heads, dk).transpose(0, 2, 1, 3)
        k = k.reshape(B, S, n_heads, dk).transpose(0, 2, 1, 3)
        v = v.reshape(B, S, n_heads, dk).transpose(0, 2, 1, 3)
        s = jnp.einsum("bhqd,bhkd->bhqk", q, k) / math.sqrt(dk)
        w = jax.nn.softmax(s, axis=-1)
        c = jnp.einsum("bhqk,bhkd->bhqd", w, v)
        c = c.transpose(0, 2, 1, 3).reshape(B * S, D)
        o = (c @ params["wo_t"] + params["bo"]).reshape(B, S, D)
        return o, w

    out_ref, attn_ref = ref_forward(params, Q, K, V)
    assert jnp.allclose(out, out_ref, atol=1e-4, rtol=1e-4), \
        float(jnp.max(jnp.abs(out - out_ref)))
    assert jnp.allclose(attn, attn_ref, atol=1e-4, rtol=1e-4), \
        float(jnp.max(jnp.abs(attn - attn_ref)))

    print("KERNEL_OK")
</pallas_src>

<mosaic_0001>
module attributes {stable_mosaic.version = 11 : i64} {
  func.func @_mha_fused_kernel(%arg0: i32, %arg1: memref<1x8x32xf32, #tpu.memory_space<vmem>>, %arg2: memref<1x8x32xf32, #tpu.memory_space<vmem>>, %arg3: memref<1x8x32xf32, #tpu.memory_space<vmem>>, %arg4: memref<3x32x32xf32, #tpu.memory_space<vmem>>, %arg5: memref<3x1x32xf32, #tpu.memory_space<vmem>>, %arg6: memref<32x32xf32, #tpu.memory_space<vmem>>, %arg7: memref<1x32xf32, #tpu.memory_space<vmem>>, %arg8: memref<1x8x32xf32, #tpu.memory_space<vmem>>, %arg9: memref<1x4x8x8xf32, #tpu.memory_space<vmem>>) attributes {dimension_semantics = [#tpu.dimension_semantics<parallel>], iteration_bounds = array<i64: 2>, scalar_prefetch = 0 : i64, scratch_operands = 0 : i64, tpu.core_type = #tpu.core_type<tc>, window_params = [{transform_indices = @transform_0, window_bounds = array<i64: 1, 8, 32>}, {transform_indices = @transform_1, window_bounds = array<i64: 1, 8, 32>}, {transform_indices = @transform_2, window_bounds = array<i64: 1, 8, 32>}, {pipeline_mode = #tpu.pipeline_mode<synchronous>, transform_indices = @transform_3, window_bounds = array<i64: 3, 32, 32>}, {pipeline_mode = #tpu.pipeline_mode<synchronous>, transform_indices = @transform_4, window_bounds = array<i64: 3, 1, 32>}, {pipeline_mode = #tpu.pipeline_mode<synchronous>, transform_indices = @transform_5, window_bounds = array<i64: 32, 32>}, {pipeline_mode = #tpu.pipeline_mode<synchronous>, transform_indices = @transform_6, window_bounds = array<i64: 1, 32>}, {transform_indices = @transform_7, window_bounds = array<i64: 1, 8, 32>}, {transform_indices = @transform_8, window_bounds = array<i64: 1, 4, 8, 8>}]} {
    %c0 = arith.constant 0 : index
    %c0_0 = arith.constant 0 : index
    %c0_1 = arith.constant 0 : index
    %0 = vector.load %arg1[%c0, %c0_0, %c0_1] : memref<1x8x32xf32, #tpu.memory_space<vmem>>, vector<1x8x32xf32>
    %1 = vector.shape_cast %0 : vector<1x8x32xf32> to vector<8x32xf32>
    %c0_2 = arith.constant 0 : index
    %c0_3 = arith.constant 0 : index
    %c0_4 = arith.constant 0 : index
    %2 = vector.load %arg4[%c0_2, %c0_3, %c0_4] : memref<3x32x32xf32, #tpu.memory_space<vmem>>, vector<1x32x32xf32>
    %3 = vector.shape_cast %2 : vector<1x32x32xf32> to vector<32x32xf32>
    %cst = arith.constant dense<0.000000e+00> : vector<8x32xf32>
    %4 = tpu.matmul %1, %3, %cst {dimension_numbers = #tpu.dot_dimension_numbers<[1], [0], [0], [1], [0, 0, 1, 1], [], []>} : vector<8x32xf32>, vector<32x32xf32>, vector<8x32xf32> -> vector<8x32xf32>
    %c0_5 = arith.constant 0 : index
    %c0_6 = arith.constant 0 : index
    %c0_7 = arith.constant 0 : index
    %5 = vector.load %arg5[%c0_5, %c0_6, %c0_7] : memref<3x1x32xf32, #tpu.memory_space<vmem>>, vector<1x1x32xf32>
    %6 = vector.shape_cast %5 : vector<1x1x32xf32> to vector<1x32xf32>
    %7 = vector.broadcast %6 : vector<1x32xf32> to vector<8x32xf32>
    %8 = arith.addf %4, %7 : vector<8x32xf32>
    %c0_8 = arith.constant 0 : index
    %c0_9 = arith.constant 0 : index
    %c0_10 = arith.constant 0 : index
    %9 = vector.load %arg2[%c0_8, %c0_9, %c0_10] : memref<1x8x32xf32, #tpu.memory_space<vmem>>, vector<1x8x32xf32>
    %10 = vector.shape_cast %9 : vector<1x8x32xf32> to vector<8x32xf32>
    %c1 = arith.constant 1 : index
    %c0_11 = arith.constant 0 : index
    %c0_12 = arith.constant 0 : index
    %11 = vector.load %arg4[%c1, %c0_11, %c0_12] : memref<3x32x32xf32, #tpu.memory_space<vmem>>, vector<1x32x32xf32>
    %12 = vector.shape_cast %11 : vector<1x32x32xf32> to vector<32x32xf32>
    %cst_13 = arith.constant dense<0.000000e+00> : vector<8x32xf32>
    %13 = tpu.matmul %10, %12, %cst_13 {dimension_numbers = #tpu.dot_dimension_numbers<[1], [0], [0], [1], [0, 0, 1, 1], [], []>} : vector<8x32xf32>, vector<32x32xf32>, vector<8x32xf32> -> vector<8x32xf32>
    %c1_14 = arith.constant 1 : index
    %c0_15 = arith.constant 0 : index
    %c0_16 = arith.constant 0 : index
    %14 = vector.load %arg5[%c1_14, %c0_15, %c0_16] : memref<3x1x32xf32, #tpu.memory_space<vmem>>, vector<1x1x32xf32>
    %15 = vector.shape_cast %14 : vector<1x1x32xf32> to vector<1x32xf32>
    %16 = vector.broadcast %15 : vector<1x32xf32> to vector<8x32xf32>
    %17 = arith.addf %13, %16 : vector<8x32xf32>
    %c0_17 = arith.constant 0 : index
    %c0_18 = arith.constant 0 : index
    %c0_19 = arith.constant 0 : index
    %18 = vector.load %arg3[%c0_17, %c0_18, %c0_19] : memref<1x8x32xf32, #tpu.memory_space<vmem>>, vector<1x8x32xf32>
    %19 = vector.shape_cast %18 : vector<1x8x32xf32> to vector<8x32xf32>
    %c2 = arith.constant 2 : index
    %c0_20 = arith.constant 0 : index
    %c0_21 = arith.constant 0 : index
    %20 = vector.load %arg4[%c2, %c0_20, %c0_21] : memref<3x32x32xf32, #tpu.memory_space<vmem>>, vector<1x32x32xf32>
    %21 = vector.shape_cast %20 : vector<1x32x32xf32> to vector<32x32xf32>
    %cst_22 = arith.constant dense<0.000000e+00> : vector<8x32xf32>
    %22 = tpu.matmul %19, %21, %cst_22 {dimension_numbers = #tpu.dot_dimension_numbers<[1], [0], [0], [1], [0, 0, 1, 1], [], []>} : vector<8x32xf32>, vector<32x32xf32>, vector<8x32xf32> -> vector<8x32xf32>
    %c2_23 = arith.constant 2 : index
    %c0_24 = arith.constant 0 : index
    %c0_25 = arith.constant 0 : index
    %23 = vector.load %arg5[%c2_23, %c0_24, %c0_25] : memref<3x1x32xf32, #tpu.memory_space<vmem>>, vector<1x1x32xf32>
    %24 = vector.shape_cast %23 : vector<1x1x32xf32> to vector<1x32xf32>
    %25 = vector.broadcast %24 : vector<1x32xf32> to vector<8x32xf32>
    %26 = arith.addf %22, %25 : vector<8x32xf32>
    %27 = vector.extract_strided_slice %8 {offsets = [0, 0], sizes = [8, 8], strides = [1, 1]} : vector<8x32xf32> to vector<8x8xf32>
    %28 = vector.extract_strided_slice %17 {offsets = [0, 0], sizes = [8, 8], strides = [1, 1]} : vector<8x32xf32> to vector<8x8xf32>
    %29 = vector.extract_strided_slice %26 {offsets = [0, 0], sizes = [8, 8], strides = [1, 1]} : vector<8x32xf32> to vector<8x8xf32>
    %cst_26 = arith.constant dense<0.000000e+00> : vector<8x8xf32>
    %30 = tpu.matmul %27, %28, %cst_26 {dimension_numbers = #tpu.dot_dimension_numbers<[1], [1], [0], [0], [0, 0, 1, 0], [], []>} : vector<8x8xf32>, vector<8x8xf32>, vector<8x8xf32> -> vector<8x8xf32>
    %cst_27 = arith.constant dense<0xFF800000> : vector<8xf32>
    %31 = vector.multi_reduction <maximumf>, %30, %cst_27 [1] : vector<8x8xf32> to vector<8xf32>
    %32 = vector.shape_cast %31 : vector<8xf32> to vector<8x1xf32>
    %33 = vector.broadcast %32 : vector<8x1xf32> to vector<8x8xf32>
    %34 = arith.subf %30, %33 : vector<8x8xf32>
    %35 = math.exp %34 : vector<8x8xf32>
    %cst_28 = arith.constant dense<0.000000e+00> : vector<8xf32>
    %36 = vector.multi_reduction <add>, %35, %cst_28 [1] : vector<8x8xf32> to vector<8xf32>
    %37 = vector.shape_cast %36 : vector<8xf32> to vector<8x1xf32>
    %38 = tpu.reciprocal %37 {approx = true} : vector<8x1xf32> -> vector<8x1xf32>
    %39 = arith.mulf %37, %38 : vector<8x1xf32>
    %cst_29 = arith.constant 2.000000e+00 : f32
    %40 = vector.broadcast %cst_29 : f32 to vector<8x1xf32>
    %41 = arith.subf %40, %39 : vector<8x1xf32>
    %42 = arith.mulf %38, %41 : vector<8x1xf32>
    %43 = vector.broadcast %42 : vector<8x1xf32> to vector<8x8xf32>
    %44 = arith.mulf %35, %43 : vector<8x8xf32>
    %c0_30 = arith.constant 0 : index
    %c0_31 = arith.constant 0 : index
    %c0_32 = arith.constant 0 : index
    %c0_33 = arith.constant 0 : index
    %45 = vector.load %arg9[%c0_30, %c0_31, %c0_32, %c0_33] : memref<1x4x8x8xf32, #tpu.memory_space<vmem>>, vector<1x1x8x8xf32>
    %46 = vector.shape_cast %45 : vector<1x1x8x8xf32> to vector<8x8xf32>
    %47 = vector.shape_cast %44 : vector<8x8xf32> to vector<1x1x8x8xf32>
    tpu.vector_store %arg9[%c0_30, %c0_31, %c0_32, %c0_33], %47 {strides = array<i32>} : memref<1x4x8x8xf32, #tpu.memory_space<vmem>>, vector<1x1x8x8xf32>,
    %cst_34 = arith.constant dense<0.000000e+00> : vector<8x8xf32>
    %48 = tpu.matmul %44, %29, %cst_34 {dimension_numbers = #tpu.dot_dimension_numbers<[1], [0], [0], [1], [0, 0, 1, 1], [], []>} : vector<8x8xf32>, vector<8x8xf32>, vector<8x8xf32> -> vector<8x8xf32>
    %49 = vector.extract_strided_slice %8 {offsets = [0, 8], sizes = [8, 8], strides = [1, 1]} : vector<8x32xf32> to vector<8x8xf32>
    %50 = vector.extract_strided_slice %17 {offsets = [0, 8], sizes = [8, 8], strides = [1, 1]} : vector<8x32xf32> to vector<8x8xf32>
    %51 = vector.extract_strided_slice %26 {offsets = [0, 8], sizes = [8, 8], strides = [1, 1]} : vector<8x32xf32> to vector<8x8xf32>
    %cst_35 = arith.constant dense<0.000000e+00> : vector<8x8xf32>
    %52 = tpu.matmul %49, %50, %cst_35 {dimension_numbers = #tpu.dot_dimension_numbers<[1], [1], [0], [0], [0, 0, 1, 0], [], []>} : vector<8x8xf32>, vector<8x8xf32>, vector<8x8xf32> -> vector<8x8xf32>
    %cst_36 = arith.constant dense<0xFF800000> : vector<8xf32>
    %53 = vector.multi_reduction <maximumf>, %52, %cst_36 [1] : vector<8x8xf32> to vector<8xf32>
    %54 = vector.shape_cast %53 : vector<8xf32> to vector<8x1xf32>
    %55 = vector.broadcast %54 : vector<8x1xf32> to vector<8x8xf32>
    %56 = arith.subf %52, %55 : vector<8x8xf32>
    %57 = math.exp %56 : vector<8x8xf32>
    %cst_37 = arith.constant dense<0.000000e+00> : vector<8xf32>
    %58 = vector.multi_reduction <add>, %57, %cst_37 [1] : vector<8x8xf32> to vector<8xf32>
    %59 = vector.shape_cast %58 : vector<8xf32> to vector<8x1xf32>
    %60 = tpu.reciprocal %59 {approx = true} : vector<8x1xf32> -> vector<8x1xf32>
    %61 = arith.mulf %59, %60 : vector<8x1xf32>
    %cst_38 = arith.constant 2.000000e+00 : f32
    %62 = vector.broadcast %cst_38 : f32 to vector<8x1xf32>
    %63 = arith.subf %62, %61 : vector<8x1xf32>
    %64 = arith.mulf %60, %63 : vector<8x1xf32>
    %65 = vector.broadcast %64 : vector<8x1xf32> to vector<8x8xf32>
    %66 = arith.mulf %57, %65 : vector<8x8xf32>
    %c0_39 = arith.constant 0 : index
    %c1_40 = arith.constant 1 : index
    %c0_41 = arith.constant 0 : index
    %c0_42 = arith.constant 0 : index
    %67 = vector.load %arg9[%c0_39, %c1_40, %c0_41, %c0_42] : memref<1x4x8x8xf32, #tpu.memory_space<vmem>>, vector<1x1x8x8xf32>
    %68 = vector.shape_cast %67 : vector<1x1x8x8xf32> to vector<8x8xf32>
    %69 = vector.shape_cast %66 : vector<8x8xf32> to vector<1x1x8x8xf32>
    tpu.vector_store %arg9[%c0_39, %c1_40, %c0_41, %c0_42], %69 {strides = array<i32>} : memref<1x4x8x8xf32, #tpu.memory_space<vmem>>, vector<1x1x8x8xf32>,
    %cst_43 = arith.constant dense<0.000000e+00> : vector<8x8xf32>
    %70 = tpu.matmul %66, %51, %cst_43 {dimension_numbers = #tpu.dot_dimension_numbers<[1], [0], [0], [1], [0, 0, 1, 1], [], []>} : vector<8x8xf32>, vector<8x8xf32>, vector<8x8xf32> -> vector<8x8xf32>
    %71 = vector.extract_strided_slice %8 {offsets = [0, 16], sizes = [8, 8], strides = [1, 1]} : vector<8x32xf32> to vector<8x8xf32>
    %72 = vector.extract_strided_slice %17 {offsets = [0, 16], sizes = [8, 8], strides = [1, 1]} : vector<8x32xf32> to vector<8x8xf32>
    %73 = vector.extract_strided_slice %26 {offsets = [0, 16], sizes = [8, 8], strides = [1, 1]} : vector<8x32xf32> to vector<8x8xf32>
    %cst_44 = arith.constant dense<0.000000e+00> : vector<8x8xf32>
    %74 = tpu.matmul %71, %72, %cst_44 {dimension_numbers = #tpu.dot_dimension_numbers<[1], [1], [0], [0], [0, 0, 1, 0], [], []>} : vector<8x8xf32>, vector<8x8xf32>, vector<8x8xf32> -> vector<8x8xf32>
    %cst_45 = arith.constant dense<0xFF800000> : vector<8xf32>
    %75 = vector.multi_reduction <maximumf>, %74, %cst_45 [1] : vector<8x8xf32> to vector<8xf32>
    %76 = vector.shape_cast %75 : vector<8xf32> to vector<8x1xf32>
    %77 = vector.broadcast %76 : vector<8x1xf32> to vector<8x8xf32>
    %78 = arith.subf %74, %77 : vector<8x8xf32>
    %79 = math.exp %78 : vector<8x8xf32>
    %cst_46 = arith.constant dense<0.000000e+00> : vector<8xf32>
    %80 = vector.multi_reduction <add>, %79, %cst_46 [1] : vector<8x8xf32> to vector<8xf32>
    %81 = vector.shape_cast %80 : vector<8xf32> to vector<8x1xf32>
    %82 = tpu.reciprocal %81 {approx = true} : vector<8x1xf32> -> vector<8x1xf32>
    %83 = arith.mulf %81, %82 : vector<8x1xf32>
    %cst_47 = arith.constant 2.000000e+00 : f32
    %84 = vector.broadcast %cst_47 : f32 to vector<8x1xf32>
    %85 = arith.subf %84, %83 : vector<8x1xf32>
    %86 = arith.mulf %82, %85 : vector<8x1xf32>
    %87 = vector.broadcast %86 : vector<8x1xf32> to vector<8x8xf32>
    %88 = arith.mulf %79, %87 : vector<8x8xf32>
    %c0_48 = arith.constant 0 : index
    %c2_49 = arith.constant 2 : index
    %c0_50 = arith.constant 0 : index
    %c0_51 = arith.constant 0 : index
    %89 = vector.load %arg9[%c0_48, %c2_49, %c0_50, %c0_51] : memref<1x4x8x8xf32, #tpu.memory_space<vmem>>, vector<1x1x8x8xf32>
    %90 = vector.shape_cast %89 : vector<1x1x8x8xf32> to vector<8x8xf32>
    %91 = vector.shape_cast %88 : vector<8x8xf32> to vector<1x1x8x8xf32>
    tpu.vector_store %arg9[%c0_48, %c2_49, %c0_50, %c0_51], %91 {strides = array<i32>} : memref<1x4x8x8xf32, #tpu.memory_space<vmem>>, vector<1x1x8x8xf32>,
    %cst_52 = arith.constant dense<0.000000e+00> : vector<8x8xf32>
    %92 = tpu.matmul %88, %73, %cst_52 {dimension_numbers = #tpu.dot_dimension_numbers<[1], [0], [0], [1], [0, 0, 1, 1], [], []>} : vector<8x8xf32>, vector<8x8xf32>, vector<8x8xf32> -> vector<8x8xf32>
    %93 = vector.extract_strided_slice %8 {offsets = [0, 24], sizes = [8, 8], strides = [1, 1]} : vector<8x32xf32> to vector<8x8xf32>
    %94 = vector.extract_strided_slice %17 {offsets = [0, 24], sizes = [8, 8], strides = [1, 1]} : vector<8x32xf32> to vector<8x8xf32>
    %95 = vector.extract_strided_slice %26 {offsets = [0, 24], sizes = [8, 8], strides = [1, 1]} : vector<8x32xf32> to vector<8x8xf32>
    %cst_53 = arith.constant dense<0.000000e+00> : vector<8x8xf32>
    %96 = tpu.matmul %93, %94, %cst_53 {dimension_numbers = #tpu.dot_dimension_numbers<[1], [1], [0], [0], [0, 0, 1, 0], [], []>} : vector<8x8xf32>, vector<8x8xf32>, vector<8x8xf32> -> vector<8x8xf32>
    %cst_54 = arith.constant dense<0xFF800000> : vector<8xf32>
    %97 = vector.multi_reduction <maximumf>, %96, %cst_54 [1] : vector<8x8xf32> to vector<8xf32>
    %98 = vector.shape_cast %97 : vector<8xf32> to vector<8x1xf32>
    %99 = vector.broadcast %98 : vector<8x1xf32> to vector<8x8xf32>
    %100 = arith.subf %96, %99 : vector<8x8xf32>
    %101 = math.exp %100 : vector<8x8xf32>
    %cst_55 = arith.constant dense<0.000000e+00> : vector<8xf32>
    %102 = vector.multi_reduction <add>, %101, %cst_55 [1] : vector<8x8xf32> to vector<8xf32>
    %103 = vector.shape_cast %102 : vector<8xf32> to vector<8x1xf32>
    %104 = tpu.reciprocal %103 {approx = true} : vector<8x1xf32> -> vector<8x1xf32>
    %105 = arith.mulf %103, %104 : vector<8x1xf32>
    %cst_56 = arith.constant 2.000000e+00 : f32
    %106 = vector.broadcast %cst_56 : f32 to vector<8x1xf32>
    %107 = arith.subf %106, %105 : vector<8x1xf32>
    %108 = arith.mulf %104, %107 : vector<8x1xf32>
    %109 = vector.broadcast %108 : vector<8x1xf32> to vector<8x8xf32>
    %110 = arith.mulf %101, %109 : vector<8x8xf32>
    %c0_57 = arith.constant 0 : index
    %c3 = arith.constant 3 : index
    %c0_58 = arith.constant 0 : index
    %c0_59 = arith.constant 0 : index
    %111 = vector.load %arg9[%c0_57, %c3, %c0_58, %c0_59] : memref<1x4x8x8xf32, #tpu.memory_space<vmem>>, vector<1x1x8x8xf32>
    %112 = vector.shape_cast %111 : vector<1x1x8x8xf32> to vector<8x8xf32>
    %113 = vector.shape_cast %110 : vector<8x8xf32> to vector<1x1x8x8xf32>
    tpu.vector_store %arg9[%c0_57, %c3, %c0_58, %c0_59], %113 {strides = array<i32>} : memref<1x4x8x8xf32, #tpu.memory_space<vmem>>, vector<1x1x8x8xf32>,
    %cst_60 = arith.constant dense<0.000000e+00> : vector<8x8xf32>
    %114 = tpu.matmul %110, %95, %cst_60 {dimension_numbers = #tpu.dot_dimension_numbers<[1], [0], [0], [1], [0, 0, 1, 1], [], []>} : vector<8x8xf32>, vector<8x8xf32>, vector<8x8xf32> -> vector<8x8xf32>
    %115 = tpu.concatenate %48, %70, %92, %114 in 1 : vector<8x8xf32>, vector<8x8xf32>, vector<8x8xf32>, vector<8x8xf32> -> vector<8x32xf32>
    %c0_61 = arith.constant 0 : index
    %c0_62 = arith.constant 0 : index
    %116 = vector.load %arg6[%c0_61, %c0_62] : memref<32x32xf32, #tpu.memory_space<vmem>>, vector<32x32xf32>
    %cst_63 = arith.constant dense<0.000000e+00> : vector<8x32xf32>
    %117 = tpu.matmul %115, %116, %cst_63 {dimension_numbers = #tpu.dot_dimension_numbers<[1], [0], [0], [1], [0, 0, 1, 1], [], []>} : vector<8x32xf32>, vector<32x32xf32>, vector<8x32xf32> -> vector<8x32xf32>
    %c0_64 = arith.constant 0 : index
    %c0_65 = arith.constant 0 : index
    %118 = vector.load %arg7[%c0_64, %c0_65] : memref<1x32xf32, #tpu.memory_space<vmem>>, vector<1x32xf32>
    %119 = vector.broadcast %118 : vector<1x32xf32> to vector<8x32xf32>
    %120 = arith.addf %117, %119 : vector<8x32xf32>
    %c0_66 = arith.constant 0 : index
    %c0_67 = arith.constant 0 : index
    %c0_68 = arith.constant 0 : index
    %121 = vector.load %arg8[%c0_66, %c0_67, %c0_68] : memref<1x8x32xf32, #tpu.memory_space<vmem>>, vector<1x8x32xf32>
    %122 = vector.shape_cast %121 : vector<1x8x32xf32> to vector<8x32xf32>
    %123 = vector.shape_cast %120 : vector<8x32xf32> to vector<1x8x32xf32>
    tpu.vector_store %arg8[%c0_66, %c0_67, %c0_68], %123 {strides = array<i32>} : memref<1x8x32xf32, #tpu.memory_space<vmem>>, vector<1x8x32xf32>,
    return
  }
  func.func @transform_0(%arg0: i32) -> (i32, i32, i32) {
    %c0_i32 = arith.constant 0 : i32
    %c0_i32_0 = arith.constant 0 : i32
    %c0_i32_1 = arith.constant 0 : i32
    return %arg0, %c0_i32, %c0_i32_0 : i32, i32, i32
  }
  func.func @transform_1(%arg0: i32) -> (i32, i32, i32) {
    %c0_i32 = arith.constant 0 : i32
    %c0_i32_0 = arith.constant 0 : i32
    %c0_i32_1 = arith.constant 0 : i32
    return %arg0, %c0_i32, %c0_i32_0 : i32, i32, i32
  }
  func.func @transform_2(%arg0: i32) -> (i32, i32, i32) {
    %c0_i32 = arith.constant 0 : i32
    %c0_i32_0 = arith.constant 0 : i32
    %c0_i32_1 = arith.constant 0 : i32
    return %arg0, %c0_i32, %c0_i32_0 : i32, i32, i32
  }
  func.func @transform_3(%arg0: i32) -> (i32, i32, i32) {
    %c0_i32 = arith.constant 0 : i32
    %c0_i32_0 = arith.constant 0 : i32
    %c0_i32_1 = arith.constant 0 : i32
    %c0_i32_2 = arith.constant 0 : i32
    return %c0_i32, %c0_i32_0, %c0_i32_1 : i32, i32, i32
  }
  func.func @transform_4(%arg0: i32) -> (i32, i32, i32) {
    %c0_i32 = arith.constant 0 : i32
    %c0_i32_0 = arith.constant 0 : i32
    %c0_i32_1 = arith.constant 0 : i32
    %c0_i32_2 = arith.constant 0 : i32
    return %c0_i32, %c0_i32_0, %c0_i32_1 : i32, i32, i32
  }
  func.func @transform_5(%arg0: i32) -> (i32, i32) {
    %c0_i32 = arith.constant 0 : i32
    %c0_i32_0 = arith.constant 0 : i32
    %c0_i32_1 = arith.constant 0 : i32
    return %c0_i32, %c0_i32_0 : i32, i32
  }
  func.func @transform_6(%arg0: i32) -> (i32, i32) {
    %c0_i32 = arith.constant 0 : i32
    %c0_i32_0 = arith.constant 0 : i32
    %c0_i32_1 = arith.constant 0 : i32
    return %c0_i32, %c0_i32_0 : i32, i32
  }
  func.func @transform_7(%arg0: i32) -> (i32, i32, i32) {
    %c0_i32 = arith.constant 0 : i32
    %c0_i32_0 = arith.constant 0 : i32
    %c0_i32_1 = arith.constant 0 : i32
    return %arg0, %c0_i32, %c0_i32_0 : i32, i32, i32
  }
  func.func @transform_8(%arg0: i32) -> (i32, i32, i32, i32) {
    %c0_i32 = arith.constant 0 : i32
    %c0_i32_0 = arith.constant 0 : i32
    %c0_i32_1 = arith.constant 0 : i32
    %c0_i32_2 = arith.constant 0 : i32
    return %arg0, %c0_i32, %c0_i32_0, %c0_i32_1 : i32, i32, i32, i32
  }
}

module attributes {stable_mosaic.version = 11 : i64} {
  func.func @_mha_fused_kernel(%arg0: i32, %arg1: memref<1x8x32xf32, #tpu.memory_space<vmem>>, %arg2: memref<1x8x32xf32, #tpu.memory_space<vmem>>, %arg3: memref<1x8x32xf32, #tpu.memory_space<vmem>>, %arg4: memref<3x32x32xf32, #tpu.memory_space<vmem>>, %arg5: memref<3x1x32xf32, #tpu.memory_space<vmem>>, %arg6: memref<32x32xf32, #tpu.memory_space<vmem>>, %arg7: memref<1x32xf32, #tpu.memory_space<vmem>>, %arg8: memref<1x8x32xf32, #tpu.memory_space<vmem>>, %arg9: memref<1x4x8x8xf32, #tpu.memory_space<vmem>>) attributes {dimension_semantics = [#tpu.dimension_semantics<parallel>], iteration_bounds = array<i64: 2>, scalar_prefetch = 0 : i64, scratch_operands = 0 : i64, tpu.core_type = #tpu.core_type<tc>, window_params = [{transform_indices = @transform_0, window_bounds = array<i64: 1, 8, 32>}, {transform_indices = @transform_1, window_bounds = array<i64: 1, 8, 32>}, {transform_indices = @transform_2, window_bounds = array<i64: 1, 8, 32>}, {pipeline_mode = #tpu.pipeline_mode<synchronous>, transform_indices = @transform_3, window_bounds = array<i64: 3, 32, 32>}, {pipeline_mode = #tpu.pipeline_mode<synchronous>, transform_indices = @transform_4, window_bounds = array<i64: 3, 1, 32>}, {pipeline_mode = #tpu.pipeline_mode<synchronous>, transform_indices = @transform_5, window_bounds = array<i64: 32, 32>}, {pipeline_mode = #tpu.pipeline_mode<synchronous>, transform_indices = @transform_6, window_bounds = array<i64: 1, 32>}, {transform_indices = @transform_7, window_bounds = array<i64: 1, 8, 32>}, {transform_indices = @transform_8, window_bounds = array<i64: 1, 4, 8, 8>}]} {
    %c0 = arith.constant 0 : index
    %c0_0 = arith.constant 0 : index
    %c0_1 = arith.constant 0 : index
    %0 = vector.load %arg1[%c0, %c0_0, %c0_1] : memref<1x8x32xf32, #tpu.memory_space<vmem>>, vector<1x8x32xf32>
    %1 = vector.shape_cast %0 : vector<1x8x32xf32> to vector<8x32xf32>
    %c0_2 = arith.constant 0 : index
    %c0_3 = arith.constant 0 : index
    %c0_4 = arith.constant 0 : index
    %2 = vector.load %arg4[%c0_2, %c0_3, %c0_4] : memref<3x32x32xf32, #tpu.memory_space<vmem>>, vector<1x32x32xf32>
    %3 = vector.shape_cast %2 : vector<1x32x32xf32> to vector<32x32xf32>
    %cst = arith.constant dense<0.000000e+00> : vector<8x32xf32>
    %4 = tpu.matmul %1, %3, %cst {dimension_numbers = #tpu.dot_dimension_numbers<[1], [0], [0], [1], [0, 0, 1, 1], [], []>} : vector<8x32xf32>, vector<32x32xf32>, vector<8x32xf32> -> vector<8x32xf32>
    %c0_5 = arith.constant 0 : index
    %c0_6 = arith.constant 0 : index
    %c0_7 = arith.constant 0 : index
    %5 = vector.load %arg5[%c0_5, %c0_6, %c0_7] : memref<3x1x32xf32, #tpu.memory_space<vmem>>, vector<1x1x32xf32>
    %6 = vector.shape_cast %5 : vector<1x1x32xf32> to vector<1x32xf32>
    %7 = vector.broadcast %6 : vector<1x32xf32> to vector<8x32xf32>
    %8 = arith.addf %4, %7 : vector<8x32xf32>
    %c0_8 = arith.constant 0 : index
    %c0_9 = arith.constant 0 : index
    %c0_10 = arith.constant 0 : index
    %9 = vector.load %arg2[%c0_8, %c0_9, %c0_10] : memref<1x8x32xf32, #tpu.memory_space<vmem>>, vector<1x8x32xf32>
    %10 = vector.shape_cast %9 : vector<1x8x32xf32> to vector<8x32xf32>
    %c1 = arith.constant 1 : index
    %c0_11 = arith.constant 0 : index
    %c0_12 = arith.constant 0 : index
    %11 = vector.load %arg4[%c1, %c0_11, %c0_12] : memref<3x32x32xf32, #tpu.memory_space<vmem>>, vector<1x32x32xf32>
    %12 = vector.shape_cast %11 : vector<1x32x32xf32> to vector<32x32xf32>
    %cst_13 = arith.constant dense<0.000000e+00> : vector<8x32xf32>
    %13 = tpu.matmul %10, %12, %cst_13 {dimension_numbers = #tpu.dot_dimension_numbers<[1], [0], [0], [1], [0, 0, 1, 1], [], []>} : vector<8x32xf32>, vector<32x32xf32>, vector<8x32xf32> -> vector<8x32xf32>
    %c1_14 = arith.constant 1 : index
    %c0_15 = arith.constant 0 : index
    %c0_16 = arith.constant 0 : index
    %14 = vector.load %arg5[%c1_14, %c0_15, %c0_16] : memref<3x1x32xf32, #tpu.memory_space<vmem>>, vector<1x1x32xf32>
    %15 = vector.shape_cast %14 : vector<1x1x32xf32> to vector<1x32xf32>
    %16 = vector.broadcast %15 : vector<1x32xf32> to vector<8x32xf32>
    %17 = arith.addf %13, %16 : vector<8x32xf32>
    %c0_17 = arith.constant 0 : index
    %c0_18 = arith.constant 0 : index
    %c0_19 = arith.constant 0 : index
    %18 = vector.load %arg3[%c0_17, %c0_18, %c0_19] : memref<1x8x32xf32, #tpu.memory_space<vmem>>, vector<1x8x32xf32>
    %19 = vector.shape_cast %18 : vector<1x8x32xf32> to vector<8x32xf32>
    %c2 = arith.constant 2 : index
    %c0_20 = arith.constant 0 : index
    %c0_21 = arith.constant 0 : index
    %20 = vector.load %arg4[%c2, %c0_20, %c0_21] : memref<3x32x32xf32, #tpu.memory_space<vmem>>, vector<1x32x32xf32>
    %21 = vector.shape_cast %20 : vector<1x32x32xf32> to vector<32x32xf32>
    %cst_22 = arith.constant dense<0.000000e+00> : vector<8x32xf32>
    %22 = tpu.matmul %19, %21, %cst_22 {dimension_numbers = #tpu.dot_dimension_numbers<[1], [0], [0], [1], [0, 0, 1, 1], [], []>} : vector<8x32xf32>, vector<32x32xf32>, vector<8x32xf32> -> vector<8x32xf32>
    %c2_23 = arith.constant 2 : index
    %c0_24 = arith.constant 0 : index
    %c0_25 = arith.constant 0 : index
    %23 = vector.load %arg5[%c2_23, %c0_24, %c0_25] : memref<3x1x32xf32, #tpu.memory_space<vmem>>, vector<1x1x32xf32>
    %24 = vector.shape_cast %23 : vector<1x1x32xf32> to vector<1x32xf32>
    %25 = vector.broadcast %24 : vector<1x32xf32> to vector<8x32xf32>
    %26 = arith.addf %22, %25 : vector<8x32xf32>
    %27 = vector.extract_strided_slice %8 {offsets = [0, 0], sizes = [8, 8], strides = [1, 1]} : vector<8x32xf32> to vector<8x8xf32>
    %28 = vector.extract_strided_slice %17 {offsets = [0, 0], sizes = [8, 8], strides = [1, 1]} : vector<8x32xf32> to vector<8x8xf32>
    %29 = vector.extract_strided_slice %26 {offsets = [0, 0], sizes = [8, 8], strides = [1, 1]} : vector<8x32xf32> to vector<8x8xf32>
    %cst_26 = arith.constant dense<0.000000e+00> : vector<8x8xf32>
    %30 = tpu.matmul %27, %28, %cst_26 {dimension_numbers = #tpu.dot_dimension_numbers<[1], [1], [0], [0], [0, 0, 1, 0], [], []>} : vector<8x8xf32>, vector<8x8xf32>, vector<8x8xf32> -> vector<8x8xf32>
    %cst_27 = arith.constant dense<0xFF800000> : vector<8xf32>
    %31 = vector.multi_reduction <maximumf>, %30, %cst_27 [1] : vector<8x8xf32> to vector<8xf32>
    %32 = vector.shape_cast %31 : vector<8xf32> to vector<8x1xf32>
    %33 = vector.broadcast %32 : vector<8x1xf32> to vector<8x8xf32>
    %34 = arith.subf %30, %33 : vector<8x8xf32>
    %35 = math.exp %34 : vector<8x8xf32>
    %cst_28 = arith.constant dense<0.000000e+00> : vector<8xf32>
    %36 = vector.multi_reduction <add>, %35, %cst_28 [1] : vector<8x8xf32> to vector<8xf32>
    %37 = vector.shape_cast %36 : vector<8xf32> to vector<8x1xf32>
    %38 = tpu.reciprocal %37 {approx = true} : vector<8x1xf32> -> vector<8x1xf32>
    %39 = arith.mulf %37, %38 : vector<8x1xf32>
    %cst_29 = arith.constant 2.000000e+00 : f32
    %40 = vector.broadcast %cst_29 : f32 to vector<8x1xf32>
    %41 = arith.subf %40, %39 : vector<8x1xf32>
    %42 = arith.mulf %38, %41 : vector<8x1xf32>
    %43 = vector.broadcast %42 : vector<8x1xf32> to vector<8x8xf32>
    %44 = arith.mulf %35, %43 : vector<8x8xf32>
    %c0_30 = arith.constant 0 : index
    %c0_31 = arith.constant 0 : index
    %c0_32 = arith.constant 0 : index
    %c0_33 = arith.constant 0 : index
    %45 = vector.load %arg9[%c0_30, %c0_31, %c0_32, %c0_33] : memref<1x4x8x8xf32, #tpu.memory_space<vmem>>, vector<1x1x8x8xf32>
    %46 = vector.shape_cast %45 : vector<1x1x8x8xf32> to vector<8x8xf32>
    %47 = vector.shape_cast %44 : vector<8x8xf32> to vector<1x1x8x8xf32>
    tpu.vector_store %arg9[%c0_30, %c0_31, %c0_32, %c0_33], %47 {strides = array<i32>} : memref<1x4x8x8xf32, #tpu.memory_space<vmem>>, vector<1x1x8x8xf32>,
    %cst_34 = arith.constant dense<0.000000e+00> : vector<8x8xf32>
    %48 = tpu.matmul %44, %29, %cst_34 {dimension_numbers = #tpu.dot_dimension_numbers<[1], [0], [0], [1], [0, 0, 1, 1], [], []>} : vector<8x8xf32>, vector<8x8xf32>, vector<8x8xf32> -> vector<8x8xf32>
    %49 = vector.extract_strided_slice %8 {offsets = [0, 8], sizes = [8, 8], strides = [1, 1]} : vector<8x32xf32> to vector<8x8xf32>
    %50 = vector.extract_strided_slice %17 {offsets = [0, 8], sizes = [8, 8], strides = [1, 1]} : vector<8x32xf32> to vector<8x8xf32>
    %51 = vector.extract_strided_slice %26 {offsets = [0, 8], sizes = [8, 8], strides = [1, 1]} : vector<8x32xf32> to vector<8x8xf32>
    %cst_35 = arith.constant dense<0.000000e+00> : vector<8x8xf32>
    %52 = tpu.matmul %49, %50, %cst_35 {dimension_numbers = #tpu.dot_dimension_numbers<[1], [1], [0], [0], [0, 0, 1, 0], [], []>} : vector<8x8xf32>, vector<8x8xf32>, vector<8x8xf32> -> vector<8x8xf32>
    %cst_36 = arith.constant dense<0xFF800000> : vector<8xf32>
    %53 = vector.multi_reduction <maximumf>, %52, %cst_36 [1] : vector<8x8xf32> to vector<8xf32>
    %54 = vector.shape_cast %53 : vector<8xf32> to vector<8x1xf32>
    %55 = vector.broadcast %54 : vector<8x1xf32> to vector<8x8xf32>
    %56 = arith.subf %52, %55 : vector<8x8xf32>
    %57 = math.exp %56 : vector<8x8xf32>
    %cst_37 = arith.constant dense<0.000000e+00> : vector<8xf32>
    %58 = vector.multi_reduction <add>, %57, %cst_37 [1] : vector<8x8xf32> to vector<8xf32>
    %59 = vector.shape_cast %58 : vector<8xf32> to vector<8x1xf32>
    %60 = tpu.reciprocal %59 {approx = true} : vector<8x1xf32> -> vector<8x1xf32>
    %61 = arith.mulf %59, %60 : vector<8x1xf32>
    %cst_38 = arith.constant 2.000000e+00 : f32
    %62 = vector.broadcast %cst_38 : f32 to vector<8x1xf32>
    %63 = arith.subf %62, %61 : vector<8x1xf32>
    %64 = arith.mulf %60, %63 : vector<8x1xf32>
    %65 = vector.broadcast %64 : vector<8x1xf32> to vector<8x8xf32>
    %66 = arith.mulf %57, %65 : vector<8x8xf32>
    %c0_39 = arith.constant 0 : index
    %c1_40 = arith.constant 1 : index
    %c0_41 = arith.constant 0 : index
    %c0_42 = arith.constant 0 : index
    %67 = vector.load %arg9[%c0_39, %c1_40, %c0_41, %c0_42] : memref<1x4x8x8xf32, #tpu.memory_space<vmem>>, vector<1x1x8x8xf32>
    %68 = vector.shape_cast %67 : vector<1x1x8x8xf32> to vector<8x8xf32>
    %69 = vector.shape_cast %66 : vector<8x8xf32> to vector<1x1x8x8xf32>
    tpu.vector_store %arg9[%c0_39, %c1_40, %c0_41, %c0_42], %69 {strides = array<i32>} : memref<1x4x8x8xf32, #tpu.memory_space<vmem>>, vector<1x1x8x8xf32>,
    %cst_43 = arith.constant dense<0.000000e+00> : vector<8x8xf32>
    %70 = tpu.matmul %66, %51, %cst_43 {dimension_numbers = #tpu.dot_dimension_numbers<[1], [0], [0], [1], [0, 0, 1, 1], [], []>} : vector<8x8xf32>, vector<8x8xf32>, vector<8x8xf32> -> vector<8x8xf32>
    %71 = vector.extract_strided_slice %8 {offsets = [0, 16], sizes = [8, 8], strides = [1, 1]} : vector<8x32xf32> to vector<8x8xf32>
    %72 = vector.extract_strided_slice %17 {offsets = [0, 16], sizes = [8, 8], strides = [1, 1]} : vector<8x32xf32> to vector<8x8xf32>
    %73 = vector.extract_strided_slice %26 {offsets = [0, 16], sizes = [8, 8], strides = [1, 1]} : vector<8x32xf32> to vector<8x8xf32>
    %cst_44 = arith.constant dense<0.000000e+00> : vector<8x8xf32>
    %74 = tpu.matmul %71, %72, %cst_44 {dimension_numbers = #tpu.dot_dimension_numbers<[1], [1], [0], [0], [0, 0, 1, 0], [], []>} : vector<8x8xf32>, vector<8x8xf32>, vector<8x8xf32> -> vector<8x8xf32>
    %cst_45 = arith.constant dense<0xFF800000> : vector<8xf32>
    %75 = vector.multi_reduction <maximumf>, %74, %cst_45 [1] : vector<8x8xf32> to vector<8xf32>
    %76 = vector.shape_cast %75 : vector<8xf32> to vector<8x1xf32>
    %77 = vector.broadcast %76 : vector<8x1xf32> to vector<8x8xf32>
    %78 = arith.subf %74, %77 : vector<8x8xf32>
    %79 = math.exp %78 : vector<8x8xf32>
    %cst_46 = arith.constant dense<0.000000e+00> : vector<8xf32>
    %80 = vector.multi_reduction <add>, %79, %cst_46 [1] : vector<8x8xf32> to vector<8xf32>
    %81 = vector.shape_cast %80 : vector<8xf32> to vector<8x1xf32>
    %82 = tpu.reciprocal %81 {approx = true} : vector<8x1xf32> -> vector<8x1xf32>
    %83 = arith.mulf %81, %82 : vector<8x1xf32>
    %cst_47 = arith.constant 2.000000e+00 : f32
    %84 = vector.broadcast %cst_47 : f32 to vector<8x1xf32>
    %85 = arith.subf %84, %83 : vector<8x1xf32>
    %86 = arith.mulf %82, %85 : vector<8x1xf32>
    %87 = vector.broadcast %86 : vector<8x1xf32> to vector<8x8xf32>
    %88 = arith.mulf %79, %87 : vector<8x8xf32>
    %c0_48 = arith.constant 0 : index
    %c2_49 = arith.constant 2 : index
    %c0_50 = arith.constant 0 : index
    %c0_51 = arith.constant 0 : index
    %89 = vector.load %arg9[%c0_48, %c2_49, %c0_50, %c0_51] : memref<1x4x8x8xf32, #tpu.memory_space<vmem>>, vector<1x1x8x8xf32>
    %90 = vector.shape_cast %89 : vector<1x1x8x8xf32> to vector<8x8xf32>
    %91 = vector.shape_cast %88 : vector<8x8xf32> to vector<1x1x8x8xf32>
    tpu.vector_store %arg9[%c0_48, %c2_49, %c0_50, %c0_51], %91 {strides = array<i32>} : memref<1x4x8x8xf32, #tpu.memory_space<vmem>>, vector<1x1x8x8xf32>,
    %cst_52 = arith.constant dense<0.000000e+00> : vector<8x8xf32>
    %92 = tpu.matmul %88, %73, %cst_52 {dimension_numbers = #tpu.dot_dimension_numbers<[1], [0], [0], [1], [0, 0, 1, 1], [], []>} : vector<8x8xf32>, vector<8x8xf32>, vector<8x8xf32> -> vector<8x8xf32>
    %93 = vector.extract_strided_slice %8 {offsets = [0, 24], sizes = [8, 8], strides = [1, 1]} : vector<8x32xf32> to vector<8x8xf32>
    %94 = vector.extract_strided_slice %17 {offsets = [0, 24], sizes = [8, 8], strides = [1, 1]} : vector<8x32xf32> to vector<8x8xf32>
    %95 = vector.extract_strided_slice %26 {offsets = [0, 24], sizes = [8, 8], strides = [1, 1]} : vector<8x32xf32> to vector<8x8xf32>
    %cst_53 = arith.constant dense<0.000000e+00> : vector<8x8xf32>
    %96 = tpu.matmul %93, %94, %cst_53 {dimension_numbers = #tpu.dot_dimension_numbers<[1], [1], [0], [0], [0, 0, 1, 0], [], []>} : vector<8x8xf32>, vector<8x8xf32>, vector<8x8xf32> -> vector<8x8xf32>
    %cst_54 = arith.constant dense<0xFF800000> : vector<8xf32>
    %97 = vector.multi_reduction <maximumf>, %96, %cst_54 [1] : vector<8x8xf32> to vector<8xf32>
    %98 = vector.shape_cast %97 : vector<8xf32> to vector<8x1xf32>
    %99 = vector.broadcast %98 : vector<8x1xf32> to vector<8x8xf32>
    %100 = arith.subf %96, %99 : vector<8x8xf32>
    %101 = math.exp %100 : vector<8x8xf32>
    %cst_55 = arith.constant dense<0.000000e+00> : vector<8xf32>
    %102 = vector.multi_reduction <add>, %101, %cst_55 [1] : vector<8x8xf32> to vector<8xf32>
    %103 = vector.shape_cast %102 : vector<8xf32> to vector<8x1xf32>
    %104 = tpu.reciprocal %103 {approx = true} : vector<8x1xf32> -> vector<8x1xf32>
    %105 = arith.mulf %103, %104 : vector<8x1xf32>
    %cst_56 = arith.constant 2.000000e+00 : f32
    %106 = vector.broadcast %cst_56 : f32 to vector<8x1xf32>
    %107 = arith.subf %106, %105 : vector<8x1xf32>
    %108 = arith.mulf %104, %107 : vector<8x1xf32>
    %109 = vector.broadcast %108 : vector<8x1xf32> to vector<8x8xf32>
    %110 = arith.mulf %101, %109 : vector<8x8xf32>
    %c0_57 = arith.constant 0 : index
    %c3 = arith.constant 3 : index
    %c0_58 = arith.constant 0 : index
    %c0_59 = arith.constant 0 : index
    %111 = vector.load %arg9[%c0_57, %c3, %c0_58, %c0_59] : memref<1x4x8x8xf32, #tpu.memory_space<vmem>>, vector<1x1x8x8xf32>
    %112 = vector.shape_cast %111 : vector<1x1x8x8xf32> to vector<8x8xf32>
    %113 = vector.shape_cast %110 : vector<8x8xf32> to vector<1x1x8x8xf32>
    tpu.vector_store %arg9[%c0_57, %c3, %c0_58, %c0_59], %113 {strides = array<i32>} : memref<1x4x8x8xf32, #tpu.memory_space<vmem>>, vector<1x1x8x8xf32>,
    %cst_60 = arith.constant dense<0.000000e+00> : vector<8x8xf32>
    %114 = tpu.matmul %110, %95, %cst_60 {dimension_numbers = #tpu.dot_dimension_numbers<[1], [0], [0], [1], [0, 0, 1, 1], [], []>} : vector<8x8xf32>, vector<8x8xf32>, vector<8x8xf32> -> vector<8x8xf32>
    %115 = tpu.concatenate %48, %70, %92, %114 in 1 : vector<8x8xf32>, vector<8x8xf32>, vector<8x8xf32>, vector<8x8xf32> -> vector<8x32xf32>
    %c0_61 = arith.constant 0 : index
    %c0_62 = arith.constant 0 : index
    %116 = vector.load %arg6[%c0_61, %c0_62] : memref<32x32xf32, #tpu.memory_space<vmem>>, vector<32x32xf32>
    %cst_63 = arith.constant dense<0.000000e+00> : vector<8x32xf32>
    %117 = tpu.matmul %115, %116, %cst_63 {dimension_numbers = #tpu.dot_dimension_numbers<[1], [0], [0], [1], [0, 0, 1, 1], [], []>} : vector<8x32xf32>, vector<32x32xf32>, vector<8x32xf32> -> vector<8x32xf32>
    %c0_64 = arith.constant 0 : index
    %c0_65 = arith.constant 0 : index
    %118 = vector.load %arg7[%c0_64, %c0_65] : memref<1x32xf32, #tpu.memory_space<vmem>>, vector<1x32xf32>
    %119 = vector.broadcast %118 : vector<1x32xf32> to vector<8x32xf32>
    %120 = arith.addf %117, %119 : vector<8x32xf32>
    %c0_66 = arith.constant 0 : index
    %c0_67 = arith.constant 0 : index
    %c0_68 = arith.constant 0 : index
    %121 = vector.load %arg8[%c0_66, %c0_67, %c0_68] : memref<1x8x32xf32, #tpu.memory_space<vmem>>, vector<1x8x32xf32>
    %122 = vector.shape_cast %121 : vector<1x8x32xf32> to vector<8x32xf32>
    %123 = vector.shape_cast %120 : vector<8x32xf32> to vector<1x8x32xf32>
    tpu.vector_store %arg8[%c0_66, %c0_67, %c0_68], %123 {strides = array<i32>} : memref<1x8x32xf32, #tpu.memory_space<vmem>>, vector<1x8x32xf32>,
    return
  }
  func.func @transform_0(%arg0: i32) -> (i32, i32, i32) {
    %c0_i32 = arith.constant 0 : i32
    %c0_i32_0 = arith.constant 0 : i32
    %c0_i32_1 = arith.constant 0 : i32
    return %arg0, %c0_i32, %c0_i32_0 : i32, i32, i32
  }
  func.func @transform_1(%arg0: i32) -> (i32, i32, i32) {
    %c0_i32 = arith.constant 0 : i32
    %c0_i32_0 = arith.constant 0 : i32
    %c0_i32_1 = arith.constant 0 : i32
    return %arg0, %c0_i32, %c0_i32_0 : i32, i32, i32
  }
  func.func @transform_2(%arg0: i32) -> (i32, i32, i32) {
    %c0_i32 = arith.constant 0 : i32
    %c0_i32_0 = arith.constant 0 : i32
    %c0_i32_1 = arith.constant 0 : i32
    return %arg0, %c0_i32, %c0_i32_0 : i32, i32, i32
  }
  func.func @transform_3(%arg0: i32) -> (i32, i32, i32) {
    %c0_i32 = arith.constant 0 : i32
    %c0_i32_0 = arith.constant 0 : i32
    %c0_i32_1 = arith.constant 0 : i32
    %c0_i32_2 = arith.constant 0 : i32
    return %c0_i32, %c0_i32_0, %c0_i32_1 : i32, i32, i32
  }
  func.func @transform_4(%arg0: i32) -> (i32, i32, i32) {
    %c0_i32 = arith.constant 0 : i32
    %c0_i32_0 = arith.constant 0 : i32
    %c0_i32_1 = arith.constant 0 : i32
    %c0_i32_2 = arith.constant 0 : i32
    return %c0_i32, %c0_i32_0, %c0_i32_1 : i32, i32, i32
  }
  func.func @transform_5(%arg0: i32) -> (i32, i32) {
    %c0_i32 = arith.constant 0 : i32
    %c0_i32_0 = arith.constant 0 : i32
    %c0_i32_1 = arith.constant 0 : i32
    return %c0_i32, %c0_i32_0 : i32, i32
  }
  func.func @transform_6(%arg0: i32) -> (i32, i32) {
    %c0_i32 = arith.constant 0 : i32
    %c0_i32_0 = arith.constant 0 : i32
    %c0_i32_1 = arith.constant 0 : i32
    return %c0_i32, %c0_i32_0 : i32, i32
  }
  func.func @transform_7(%arg0: i32) -> (i32, i32, i32) {
    %c0_i32 = arith.constant 0 : i32
    %c0_i32_0 = arith.constant 0 : i32
    %c0_i32_1 = arith.constant 0 : i32
    return %arg0, %c0_i32, %c0_i32_0 : i32, i32, i32
  }
  func.func @transform_8(%arg0: i32) -> (i32, i32, i32, i32) {
    %c0_i32 = arith.constant 0 : i32
    %c0_i32_0 = arith.constant 0 : i32
    %c0_i32_1 = arith.constant 0 : i32
    %c0_i32_2 = arith.constant 0 : i32
    return %arg0, %c0_i32, %c0_i32_0, %c0_i32_1 : i32, i32, i32, i32
  }
}

</mosaic_0001>

<llo_original>
// kernel: tpu_custom_call.1
$region0: #{tpu_custom_call.1}
  #allocation0 [shape = 'u32[]', space=smem, size = 0x4, offset = 0x4, fixed_abs, tag = 'smem constant byte address 0x4 - core index']
  #allocation1 [shape = 'u32[72,128]{1,0:T(1,128)}', space=vmem, size = 0x9000, scoped, tag = 'internal scratch']
  %s0 = inlined_call_operand.hbm [shape: f32[2,8,32], index: 0, kind: input, shape index: {}]
  %s1 = inlined_call_operand.hbm [shape: f32[2,8,32], index: 1, kind: input, shape index: {}]
  %s2 = inlined_call_operand.hbm [shape: f32[2,8,32], index: 2, kind: input, shape index: {}]
  %s3 = inlined_call_operand.hbm [shape: f32[3,32,32], index: 3, kind: input, shape index: {}]
  %s4 = inlined_call_operand.vmem [shape: f32[3,1,32], index: 4, kind: input, shape index: {}]
  %s5 = inlined_call_operand.hbm [shape: f32[32,32], index: 5, kind: input, shape index: {}]
  %s6 = inlined_call_operand.vmem [shape: f32[1,32], index: 6, kind: input, shape index: {}]
  %s7 = inlined_call_operand.hbm [shape: f32[2,8,32], index: 7, kind: output, shape index: {0}]
  %s8 = inlined_call_operand.hbm [shape: f32[2,4,8,8], index: 8, kind: output, shape index: {1}]
  %9 = xla_tuple %s7, %s8
  %s10 = sld [smem:[#allocation0]]
  $region89: #{tpu_custom_call.1} parent=0
    _
  %s12 = ssub.s32 1, %s10
  %s13 = scalar_select 0, %s12, %s10
  $region1: #{tpu_custom_call.1} parent=0
    #allocation2 [shape = 'u8[8192]{0}', space=vmem, size = 0x2000, scoped, tag = 'input window, operand 0']
    #allocation3 [shape = 's32[2]{0}', space=sflag, size = 0x8, scoped, tag = 'scoped memory for tpu_custom_call.1']
    #allocation4 [shape = 's32[2]{0}', space=sflag, size = 0x8, scoped, tag = 'scoped memory for tpu_custom_call.1']
    #allocation5 [shape = 'u8[8192]{0}', space=vmem, size = 0x2000, scoped, tag = 'input window, operand 1']
    #allocation6 [shape = 's32[2]{0}', space=sflag, size = 0x8, scoped, tag = 'scoped memory for tpu_custom_call.1']
    #allocation7 [shape = 'u8[8192]{0}', space=vmem, size = 0x2000, scoped, tag = 'input window, operand 2']
    #allocation8 [shape = 'u8[49152]{0}', space=vmem, size = 0xc000, scoped, tag = 'input window, operand 3, single buffered']
    #allocation9 [shape = 's32[1]{0}', space=sflag, size = 0x4, scoped, tag = 'scoped memory for tpu_custom_call.1']
    #allocation10 [shape = 'u8[16384]{0}', space=vmem, size = 0x4000, scoped, tag = 'input window, operand 5, single buffered']
    #allocation11 [shape = 'u8[8192]{0}', space=vmem, size = 0x2000, scoped, tag = 'output window, operand 0']
    #allocation12 [shape = 'u8[32768]{0}', space=vmem, size = 0x8000, scoped, tag = 'output window, operand 1']
    #allocation13 [shape = 's32[2]{0}', space=sflag, size = 0x8, scoped, tag = 'scoped memory for tpu_custom_call.1']
    %14 = vsyncpa [#allocation3], 0
    %s15 = scalar_lea.sflag [#allocation3], 1
    %16 = vsyncpa %s15, 0
    %17 = vsyncpa [#allocation6], 0
    %s18 = scalar_lea.sflag [#allocation6], 1
    %19 = vsyncpa %s18, 0
    %20 = vsyncpa [#allocation9], 0
    %21 = vsyncpa [#allocation4], 0
    %s22 = scalar_lea.sflag [#allocation4], 1
    %23 = vsyncpa %s22, 0
    %24 = vsyncpa [#allocation13], 0
    %s25 = scalar_lea.sflag [#allocation13], 1
    %26 = vsyncpa %s25, 0
    loop: start=0, step=1, limit=4
    $region2: #{tpu_custom_call.1} parent=1 // loop_pre_header
      _
    $region3: #{tpu_custom_call.1} parent=1 // loop_header
      %s28 = sphi 0, %s32
      %p29 = scmp.ge.s32.totalorder %s28, 4
      %s38 = sphi 0, %s40
      %s41 = sphi 0, %s38
      %s42 = sphi 0, %s41
      %s58 = sphi 0, %s42
      %s64 = sphi 0, %s66
      %s67 = sphi 0, %s64
      %s68 = sphi 0, %s67
      %s84 = sphi 0, %s68
      %s90 = sphi 0, %s92
      %s93 = sphi 0, %s90
      %s94 = sphi 0, %s93
      %s110 = sphi 0, %s94
      %s114 = sphi 0, %s114
      %s116 = sphi 0, %s114
      %s117 = sphi 0, %s116
      %s131 = sphi 0, %s117
      %s135 = sphi 0, %s135
      %s137 = sphi 0, %s135
      %s138 = sphi 0, %s137
      %s152 = sphi 0, %s138
      %s156 = sphi 0, %s156
      %s158 = sphi 0, %s156
      %s159 = sphi 0, %s158
      %s173 = sphi 0, %s159
      %s177 = sphi 0, %s177
      %s179 = sphi 0, %s177
      %s180 = sphi 0, %s179
      %s194 = sphi 0, %s180
      %s200 = sphi 0, %s202
      %s203 = sphi 0, %s200
      %s204 = sphi 0, %s203
      %s220 = sphi 0, %s204
      %s226 = sphi 0, %s228
      %s229 = sphi 0, %s226
      %s230 = sphi 0, %s229
      %s246 = sphi 0, %s230
    $region4: #{tpu_custom_call.1} parent=1 // loop_header_branch
      %31 = sbr.rel (%p29) target = $region8
    $region5: #{tpu_custom_call.1} parent=1 // loop_body
      %s33 = ssub.s32 %s28, 1
      %s34 = ssub.s32 %s28, 2
      %s35 = sadd.s32 %s28, 1
      %s36 = ssub.s32 %s28, %s35
      %p37 = scmp.eq.s32.totalorder %s36, 0
      %s39 = sadd.s32 %s38, 1
      %s40 = scalar_select %p37, %s38, %s39
      %p43 = pneg %p37
      %p44 = scmp.eq.s32.totalorder %s28, 1
      %p45 = por %p43, %p44
      %p46 = scmp.ne.s32.totalorder %s38, %s41
      %p47 = scmp.eq.s32.totalorder %s28, 0
      %p48 = por %p46, %p47
      %p49 = scmp.ne.s32.totalorder %s38, %s41
      %p50 = scmp.eq.s32.totalorder %s33, 1
      %p51 = por %p49, %p50
      %p52 = scmp.ne.s32.totalorder %s41, %s42
      %p53 = scmp.eq.s32.totalorder %s33, 0
      %p54 = por %p52, %p53
      %p55 = scmp.ne.s32.totalorder %s41, %s42
      %p56 = scmp.eq.s32.totalorder %s34, 1
      %p57 = por %p55, %p56
      %p59 = scmp.ne.s32.totalorder %s42, %s58
      %p60 = scmp.eq.s32.totalorder %s34, 0
      %p61 = por %p59, %p60
      %s62 = ssub.s32 %s28, %s35
      %p63 = scmp.eq.s32.totalorder %s62, 0
      %s65 = sadd.s32 %s64, 1
      %s66 = scalar_select %p63, %s64, %s65
      %p69 = pneg %p63
      %p70 = scmp.eq.s32.totalorder %s28, 1
      %p71 = por %p69, %p70
      %p72 = scmp.ne.s32.totalorder %s64, %s67
      %p73 = scmp.eq.s32.totalorder %s28, 0
      %p74 = por %p72, %p73
      %p75 = scmp.ne.s32.totalorder %s64, %s67
      %p76 = scmp.eq.s32.totalorder %s33, 1
      %p77 = por %p75, %p76
      %p78 = scmp.ne.s32.totalorder %s67, %s68
      %p79 = scmp.eq.s32.totalorder %s33, 0
      %p80 = por %p78, %p79
      %p81 = scmp.ne.s32.totalorder %s67, %s68
      %p82 = scmp.eq.s32.totalorder %s34, 1
      %p83 = por %p81, %p82
      %p85 = scmp.ne.s32.totalorder %s68, %s84
      %p86 = scmp.eq.s32.totalorder %s34, 0
      %p87 = por %p85, %p86
      %s88 = ssub.s32 %s28, %s35
      %p89 = scmp.eq.s32.totalorder %s88, 0
      %s91 = sadd.s32 %s90, 1
      %s92 = scalar_select %p89, %s90, %s91
      %p95 = pneg %p89
      %p96 = scmp.eq.s32.totalorder %s28, 1
      %p97 = por %p95, %p96
      %p98 = scmp.ne.s32.totalorder %s90, %s93
      %p99 = scmp.eq.s32.totalorder %s28, 0
      %p100 = por %p98, %p99
      %p101 = scmp.ne.s32.totalorder %s90, %s93
      %p102 = scmp.eq.s32.totalorder %s33, 1
      %p103 = por %p101, %p102
      %p104 = scmp.ne.s32.totalorder %s93, %s94
      %p105 = scmp.eq.s32.totalorder %s33, 0
      %p106 = por %p104, %p105
      %p107 = scmp.ne.s32.totalorder %s93, %s94
      %p108 = scmp.eq.s32.totalorder %s34, 1
      %p109 = por %p107, %p108
      %p111 = scmp.ne.s32.totalorder %s94, %s110
      %p112 = scmp.eq.s32.totalorder %s34, 0
      %p113 = por %p111, %p112
      %s115 = sadd.s32 %s114, 1
      %p118 = scmp.eq.s32.totalorder %s28, 1
      %p119 = scmp.ne.s32.totalorder %s114, %s116
      %p120 = scmp.eq.s32.totalorder %s28, 0
      %p121 = por %p119, %p120
      %p122 = scmp.ne.s32.totalorder %s114, %s116
      %p123 = scmp.eq.s32.totalorder %s33, 1
      %p124 = por %p122, %p123
      %p125 = scmp.ne.s32.totalorder %s116, %s117
      %p126 = scmp.eq.s32.totalorder %s33, 0
      %p127 = por %p125, %p126
      %p128 = scmp.ne.s32.totalorder %s116, %s117
      %p129 = scmp.eq.s32.totalorder %s34, 1
      %p130 = por %p128, %p129
      %p132 = scmp.ne.s32.totalorder %s117, %s131
      %p133 = scmp.eq.s32.totalorder %s34, 0
      %p134 = por %p132, %p133
      %s136 = sadd.s32 %s135, 1
      %p139 = scmp.eq.s32.totalorder %s28, 1
      %p140 = scmp.ne.s32.totalorder %s135, %s137
      %p141 = scmp.eq.s32.totalorder %s28, 0
      %p142 = por %p140, %p141
      %p143 = scmp.ne.s32.totalorder %s135, %s137
      %p144 = scmp.eq.s32.totalorder %s33, 1
      %p145 = por %p143, %p144
      %p146 = scmp.ne.s32.totalorder %s137, %s138
      %p147 = scmp.eq.s32.totalorder %s33, 0
      %p148 = por %p146, %p147
      %p149 = scmp.ne.s32.totalorder %s137, %s138
      %p150 = scmp.eq.s32.totalorder %s34, 1
      %p151 = por %p149, %p150
      %p153 = scmp.ne.s32.totalorder %s138, %s152
      %p154 = scmp.eq.s32.totalorder %s34, 0
      %p155 = por %p153, %p154
      %s157 = sadd.s32 %s156, 1
      %p160 = scmp.eq.s32.totalorder %s28, 1
      %p161 = scmp.ne.s32.totalorder %s156, %s158
      %p162 = scmp.eq.s32.totalorder %s28, 0
      %p163 = por %p161, %p162
      %p164 = scmp.ne.s32.totalorder %s156, %s158
      %p165 = scmp.eq.s32.totalorder %s33, 1
      %p166 = por %p164, %p165
      %p167 = scmp.ne.s32.totalorder %s158, %s159
      %p168 = scmp.eq.s32.totalorder %s33, 0
      %p169 = por %p167, %p168
      %p170 = scmp.ne.s32.totalorder %s158, %s159
      %p171 = scmp.eq.s32.totalorder %s34, 1
      %p172 = por %p170, %p171
      %p174 = scmp.ne.s32.totalorder %s159, %s173
      %p175 = scmp.eq.s32.totalorder %s34, 0
      %p176 = por %p174, %p175
      %s178 = sadd.s32 %s177, 1
      %p181 = scmp.eq.s32.totalorder %s28, 1
      %p182 = scmp.ne.s32.totalorder %s177, %s179
      %p183 = scmp.eq.s32.totalorder %s28, 0
      %p184 = por %p182, %p183
      %p185 = scmp.ne.s32.totalorder %s177, %s179
      %p186 = scmp.eq.s32.totalorder %s33, 1
      %p187 = por %p185, %p186
      %p188 = scmp.ne.s32.totalorder %s179, %s180
      %p189 = scmp.eq.s32.totalorder %s33, 0
      %p190 = por %p188, %p189
      %p191 = scmp.ne.s32.totalorder %s179, %s180
      %p192 = scmp.eq.s32.totalorder %s34, 1
      %p193 = por %p191, %p192
      %p195 = scmp.ne.s32.totalorder %s180, %s194
      %p196 = scmp.eq.s32.totalorder %s34, 0
      %p197 = por %p195, %p196
      %s198 = ssub.s32 %s28, %s35
      %p199 = scmp.eq.s32.totalorder %s198, 0
      %s201 = sadd.s32 %s200, 1
      %s202 = scalar_select %p199, %s200, %s201
      %p205 = pneg %p199
      %p206 = scmp.eq.s32.totalorder %s28, 1
      %p207 = por %p205, %p206
      %p208 = scmp.ne.s32.totalorder %s200, %s203
      %p209 = scmp.eq.s32.totalorder %s28, 0
      %p210 = por %p208, %p209
      %p211 = scmp.ne.s32.totalorder %s200, %s203
      %p212 = scmp.eq.s32.totalorder %s33, 1
      %p213 = por %p211, %p212
      %p214 = scmp.ne.s32.totalorder %s203, %s204
      %p215 = scmp.eq.s32.totalorder %s33, 0
      %p216 = por %p214, %p215
      %p217 = scmp.ne.s32.totalorder %s203, %s204
      %p218 = scmp.eq.s32.totalorder %s34, 1
      %p219 = por %p217, %p218
      %p221 = scmp.ne.s32.totalorder %s204, %s220
      %p222 = scmp.eq.s32.totalorder %s34, 0
      %p223 = por %p221, %p222
      %s224 = ssub.s32 %s28, %s35
      %p225 = scmp.eq.s32.totalorder %s224, 0
      %s227 = sadd.s32 %s226, 1
      %s228 = scalar_select %p225, %s226, %s227
      %p231 = pneg %p225
      %p232 = scmp.eq.s32.totalorder %s28, 1
      %p233 = por %p231, %p232
      %p234 = scmp.ne.s32.totalorder %s226, %s229
      %p235 = scmp.eq.s32.totalorder %s28, 0
      %p236 = por %p234, %p235
      %p237 = scmp.ne.s32.totalorder %s226, %s229
      %p238 = scmp.eq.s32.totalorder %s33, 1
      %p239 = por %p237, %p238
      %p240 = scmp.ne.s32.totalorder %s229, %s230
      %p241 = scmp.eq.s32.totalorder %s33, 0
      %p242 = por %p240, %p241
      %p243 = scmp.ne.s32.totalorder %s229, %s230
      %p244 = scmp.eq.s32.totalorder %s34, 1
      %p245 = por %p243, %p244
      %p247 = scmp.ne.s32.totalorder %s230, %s246
      %p248 = scmp.eq.s32.totalorder %s34, 0
      %p249 = por %p247, %p248
      %p250 = scmp.le.s32.totalorder 1, %s28
      %p251 = scmp.lt.s32.totalorder %s28, 3
      %p252 = pnand %p250, %p251
      %p253 = pneg %p252
      // Predicated region
      $region9: #{tpu_custom_call.1} parent=5 // pred_check
        _
      $region10: #{tpu_custom_call.1} parent=5 // pred_check_branch
        %255 = sbr.rel (%p252) target = $region12
      $region11: #{tpu_custom_call.1} parent=5 // pred_region
        %s256 = ssub.s32 %s28, 1
        // Predicated region
        $region13: #{tpu_custom_call.1} parent=11 // pred_check
          %p257 = pneg %p127
        $region14: #{tpu_custom_call.1} parent=11 // pred_check_branch
          %259 = sbr.rel (%p257) target = $region16
        $region15: #{tpu_custom_call.1} parent=11 // pred_region
          %261 = vsyncadd [#allocation9], 0
          %s262 = sshll.u32 %s3, 4
          %s263 = int_to_ptr.hbm [resolvable:$true] %s262
          %s264 = sshll.u32 [#allocation8], 4
          %s265 = int_to_ptr.vmem [resolvable:$true] %s264
          %270 = dma.hbm_to_vmem [thread:$0]  %s263, 1536, %s265, [#allocation9], 128, 128, 8
        $region16: #{tpu_custom_call.1} parent=11 // pred_fallthru
          _
        // Predicated region
        $region17: #{tpu_custom_call.1} parent=11 // pred_check
          %p271 = pneg %p148
        $region18: #{tpu_custom_call.1} parent=11 // pred_check_branch
          %273 = sbr.rel (%p271) target = $region20
        $region19: #{tpu_custom_call.1} parent=11 // pred_region
          _
        $region20: #{tpu_custom_call.1} parent=11 // pred_fallthru
          _
        // Predicated region
        $region21: #{tpu_custom_call.1} parent=11 // pred_check
          %p274 = pneg %p169
        $region22: #{tpu_custom_call.1} parent=11 // pred_check_branch
          %276 = sbr.rel (%p274) target = $region24
        $region23: #{tpu_custom_call.1} parent=11 // pred_region
          %278 = vsyncadd [#allocation9], 0
          %s279 = sshll.u32 %s5, 4
          %s280 = int_to_ptr.hbm [resolvable:$true] %s279
          %s281 = sshll.u32 [#allocation10], 4
          %s282 = int_to_ptr.vmem [resolvable:$true] %s281
          %287 = dma.hbm_to_vmem [thread:$0]  %s280, 512, %s282, [#allocation9], 128, 128, 8
        $region24: #{tpu_custom_call.1} parent=11 // pred_fallthru
          _
        // Predicated region
        $region25: #{tpu_custom_call.1} parent=11 // pred_check
          %p288 = pneg %p190
        $region26: #{tpu_custom_call.1} parent=11 // pred_check_branch
          %290 = sbr.rel (%p288) target = $region28
        $region27: #{tpu_custom_call.1} parent=11 // pred_region
          _
        $region28: #{tpu_custom_call.1} parent=11 // pred_fallthru
          _
      $region12: #{tpu_custom_call.1} parent=5 // pred_fallthru
        _
      %p291 = scmp.lt.s32.totalorder %s28, 2
      // Predicated region
      $region29: #{tpu_custom_call.1} parent=5 // pred_check
        %p292 = pneg %p291
      $region30: #{tpu_custom_call.1} parent=5 // pred_check_branch
        %294 = sbr.rel (%p292) target = $region32
      $region31: #{tpu_custom_call.1} parent=5 // pred_region
        // Predicated region
        $region33: #{tpu_custom_call.1} parent=31 // pred_check
          %p295 = pneg %p48
        $region34: #{tpu_custom_call.1} parent=31 // pred_check_branch
          %297 = sbr.rel (%p295) target = $region36
        $region35: #{tpu_custom_call.1} parent=31 // pred_region
          %s298 = sand.u32 %s38, 1
          %s299 = scalar_lea.sflag [#allocation3], %s298
          %s300 = sand.u32 %s38, 1
          %s301 = smul.addr %s300, 8
          %s302 = scalar_lea.vmem [#allocation2], %s301
          %304 = vsyncadd %s299, 0
          %s305 = smul.addr %s28, 8
          %s306 = scalar_lea.hbm %s0, %s305
          %s308 = sshll.u32 %s306, 4
          %s309 = int_to_ptr.hbm [resolvable:$true] %s308
          %s310 = sshll.u32 %s302, 4
          %s311 = int_to_ptr.vmem [resolvable:$true] %s310
          %313 = dma.hbm_to_vmem [thread:$0]  %s309, 128, %s311, %s299
        $region36: #{tpu_custom_call.1} parent=31 // pred_fallthru
          _
        // Predicated region
        $region37: #{tpu_custom_call.1} parent=31 // pred_check
          %p314 = pneg %p74
        $region38: #{tpu_custom_call.1} parent=31 // pred_check_branch
          %316 = sbr.rel (%p314) target = $region40
        $region39: #{tpu_custom_call.1} parent=31 // pred_region
          %s317 = sand.u32 %s28, 1
          %s318 = scalar_lea.sflag [#allocation6], %s317
          %s319 = sand.u32 %s64, 1
          %s320 = smul.addr %s319, 8
          %s321 = scalar_lea.vmem [#allocation5], %s320
          %323 = vsyncadd %s318, 0
          %s324 = smul.addr %s28, 8
          %s325 = scalar_lea.hbm %s1, %s324
          %s327 = sshll.u32 %s325, 4
          %s328 = int_to_ptr.hbm [resolvable:$true] %s327
          %s329 = sshll.u32 %s321, 4
          %s330 = int_to_ptr.vmem [resolvable:$true] %s329
          %332 = dma.hbm_to_vmem [thread:$0]  %s328, 128, %s330, %s318
        $region40: #{tpu_custom_call.1} parent=31 // pred_fallthru
          _
        // Predicated region
        $region41: #{tpu_custom_call.1} parent=31 // pred_check
          %p333 = pneg %p100
        $region42: #{tpu_custom_call.1} parent=31 // pred_check_branch
          %335 = sbr.rel (%p333) target = $region44
        $region43: #{tpu_custom_call.1} parent=31 // pred_region
          %s336 = sand.u32 %s28, 1
          %s337 = scalar_lea.sflag [#allocation6], %s336
          %s338 = sand.u32 %s90, 1
          %s339 = smul.addr %s338, 8
          %s340 = scalar_lea.vmem [#allocation7], %s339
          %342 = vsyncadd %s337, 0
          %s343 = smul.addr %s28, 8
          %s344 = scalar_lea.hbm %s2, %s343
          %s346 = sshll.u32 %s344, 4
          %s347 = int_to_ptr.hbm [resolvable:$true] %s346
          %s348 = sshll.u32 %s340, 4
          %s349 = int_to_ptr.vmem [resolvable:$true] %s348
          %351 = dma.hbm_to_vmem [thread:$0]  %s347, 128, %s349, %s337
        $region44: #{tpu_custom_call.1} parent=31 // pred_fallthru
          _
      $region32: #{tpu_custom_call.1} parent=5 // pred_fallthru
        _
      %p352 = scmp.le.s32.totalorder 1, %s28
      %p353 = scmp.lt.s32.totalorder %s28, 3
      %p354 = pnand %p352, %p353
      %p355 = pneg %p354
      // Predicated region
      $region45: #{tpu_custom_call.1} parent=5 // pred_check
        _
      $region46: #{tpu_custom_call.1} parent=5 // pred_check_branch
        %357 = sbr.rel (%p354) target = $region48
      $region47: #{tpu_custom_call.1} parent=5 // pred_region
        %s358 = ssub.s32 %s28, 1
        %s359 = sand.u32 %s41, 1
        %s360 = scalar_lea.sflag [#allocation3], %s359
        %s361 = sand.u32 %s41, 1
        %s362 = smul.addr %s361, 8
        %s363 = scalar_lea.vmem [#allocation2], %s362
        // Predicated region
        $region49: #{tpu_custom_call.1} parent=47 // pred_check
          %p364 = pneg %p54
        $region50: #{tpu_custom_call.1} parent=47 // pred_check_branch
          %366 = sbr.rel (%p364) target = $region52
        $region51: #{tpu_custom_call.1} parent=47 // pred_region
          %368 = dma.done %s360, 128
        $region52: #{tpu_custom_call.1} parent=47 // pred_fallthru
          _
        %s369 = sand.u32 %s33, 1
        %s370 = scalar_lea.sflag [#allocation6], %s369
        %s371 = sand.u32 %s67, 1
        %s372 = smul.addr %s371, 8
        %s373 = scalar_lea.vmem [#allocation5], %s372
        // Predicated region
        $region53: #{tpu_custom_call.1} parent=47 // pred_check
          %p374 = pneg %p80
        $region54: #{tpu_custom_call.1} parent=47 // pred_check_branch
          %376 = sbr.rel (%p374) target = $region56
        $region55: #{tpu_custom_call.1} parent=47 // pred_region
          %378 = dma.done %s370, 128
        $region56: #{tpu_custom_call.1} parent=47 // pred_fallthru
          _
        %s379 = sand.u32 %s33, 1
        %s380 = scalar_lea.sflag [#allocation6], %s379
        %s381 = sand.u32 %s93, 1
        %s382 = smul.addr %s381, 8
        %s383 = scalar_lea.vmem [#allocation7], %s382
        // Predicated region
        $region57: #{tpu_custom_call.1} parent=47 // pred_check
          %p384 = pneg %p106
        $region58: #{tpu_custom_call.1} parent=47 // pred_check_branch
          %386 = sbr.rel (%p384) target = $region60
        $region59: #{tpu_custom_call.1} parent=47 // pred_region
          %388 = dma.done %s380, 128
        $region60: #{tpu_custom_call.1} parent=47 // pred_fallthru
          _
        // Predicated region
        $region61: #{tpu_custom_call.1} parent=47 // pred_check
          %p389 = pneg %p127
        $region62: #{tpu_custom_call.1} parent=47 // pred_check_branch
          %391 = sbr.rel (%p389) target = $region64
        $region63: #{tpu_custom_call.1} parent=47 // pred_region
          %393 = dma.done [#allocation9], 1536
        $region64: #{tpu_custom_call.1} parent=47 // pred_fallthru
          _
        // Predicated region
        $region65: #{tpu_custom_call.1} parent=47 // pred_check
          %p394 = pneg %p169
        $region66: #{tpu_custom_call.1} parent=47 // pred_check_branch
          %396 = sbr.rel (%p394) target = $region68
        $region67: #{tpu_custom_call.1} parent=47 // pred_region
          %398 = dma.done [#allocation9], 512
        $region68: #{tpu_custom_call.1} parent=47 // pred_fallthru
          _
        %s399 = sand.u32 %s41, 1
        %s400 = scalar_lea.sflag [#allocation3], %s399
        %s401 = sand.u32 %s41, 1
        %s402 = smul.addr %s401, 8
        %s403 = scalar_lea.vmem [#allocation2], %s402
        %p404 = pneg %p54
        %p405 = pneg %p51
        %s406 = sand.u32 %s33, 1
        %s407 = scalar_lea.sflag [#allocation6], %s406
        %s408 = sand.u32 %s67, 1
        %s409 = smul.addr %s408, 8
        %s410 = scalar_lea.vmem [#allocation5], %s409
        %p411 = pneg %p80
        %p412 = pneg %p77
        %s413 = sand.u32 %s33, 1
        %s414 = scalar_lea.sflag [#allocation6], %s413
        %s415 = sand.u32 %s93, 1
        %s416 = smul.addr %s415, 8
        %s417 = scalar_lea.vmem [#allocation7], %s416
        %p418 = pneg %p106
        %p419 = pneg %p103
        %p420 = pneg %p127
        %p421 = pneg %p124
        %p422 = pneg %p148
        %p423 = pneg %p145
        %p424 = pneg %p169
        %p425 = pneg %p166
        %p426 = pneg %p190
        %p427 = pneg %p187
        %p428 = pneg %p216
        %p429 = pneg %p213
        %s430 = sand.u32 %s203, 1
        %s431 = scalar_lea.sflag [#allocation4], %s430
        %s432 = sand.u32 %s203, 1
        %s433 = smul.addr %s432, 8
        %s434 = scalar_lea.vmem [#allocation11], %s433
        %p435 = pneg %p242
        %p436 = pneg %p239
        %s437 = sand.u32 %s229, 1
        %s438 = scalar_lea.sflag [#allocation13], %s437
        %s439 = sand.u32 %s229, 1
        %s440 = smul.addr %s439, 32
        %s441 = scalar_lea.vmem [#allocation12], %s440
        %v442 = vld [vmem:[%s363] sm:$0xff]
        %v443 = vld [vmem:[#allocation8] sm:$0xff]
        %v444 = vld [vmem:[#allocation8 + $0x8] sm:$0xff]
        %v445 = vld [vmem:[#allocation8 + $0x10] sm:$0xff]
        %v446 = vld [vmem:[#allocation8 + $0x18] sm:$0xff]
        %v447 = vld [vmem:[%s4] sm:$0x1]
        %v449 = vperm.slane %v447, 0
        %vm451 = vcmask 261120
        %v453 = vsel %vm451, %v442, 0
        %455 = vmatpush.msra.mxu0 0.0
        %456 = vmatpush.msra.mxu0 0.0
        %457 = vmatpush.msra.mxu0 0.0
        %458 = vmatpush.msra.mxu0 0.0
        %459 = vmatpush.msra.mxu0 0.0
        %460 = vmatpush.msra.mxu0 0.0
        %461 = vmatpush.msra.mxu0 0.0
        %462 = vmatpush.msra.mxu0 0.0
        %463 = vmatpush.msra.mxu0 0.0
        %464 = vmatpush.msra.mxu0 0.0
        %465 = vmatpush.msra.mxu0 0.0
        %466 = vmatpush.msra.mxu0 0.0
        %467 = vmatpush.msra.mxu0 %v446
        %468 = vmatpush.msra.mxu0 %v445
        %469 = vmatpush.msra.mxu0 %v444
        %470 = vmatpush.msra.mxu0 %v443
        %471 = vmatmul.f32.gmra.mxu0 %v453
        %v472 = vpop.f32.mrf.mxu0
        %v473 = vadd.f32 %v449, %v472
        %474 = vdwg.mxu0
        %v475 = vld [vmem:[%s373] sm:$0xff]
        %s476 = scalar_lea.vmem [#allocation8], 32
        %v477 = vld [vmem:[%s476] sm:$0xff]
        %v478 = vld [vmem:[%s476 + $0x8] sm:$0xff]
        %v479 = vld [vmem:[%s476 + $0x10] sm:$0xff]
        %v480 = vld [vmem:[%s476 + $0x18] sm:$0xff]
        %s481 = scalar_lea.vmem %s4, 1
        %v482 = vld [vmem:[%s481] sm:$0x1]
        %v484 = vperm.slane %v482, 0
        %v487 = vsel %vm451, %v475, 0
        %489 = vmatpush.msra.mxu0 0.0
        %490 = vmatpush.msra.mxu0 0.0
        %491 = vmatpush.msra.mxu0 0.0
        %492 = vmatpush.msra.mxu0 0.0
        %493 = vmatpush.msra.mxu0 0.0
        %494 = vmatpush.msra.mxu0 0.0
        %495 = vmatpush.msra.mxu0 0.0
        %496 = vmatpush.msra.mxu0 0.0
        %497 = vmatpush.msra.mxu0 0.0
        %498 = vmatpush.msra.mxu0 0.0
        %499 = vmatpush.msra.mxu0 0.0
        %500 = vmatpush.msra.mxu0 0.0
        %501 = vmatpush.msra.mxu0 %v480
        %502 = vmatpush.msra.mxu0 %v479
        %503 = vmatpush.msra.mxu0 %v478
        %504 = vmatpush.msra.mxu0 %v477
        %505 = vmatmul.f32.gmra.mxu0 %v487
        %v506 = vpop.f32.mrf.mxu0
        %v507 = vadd.f32 %v484, %v506
        %508 = vdwg.mxu0
        %v509 = vld [vmem:[%s383] sm:$0xff]
        %s510 = scalar_lea.vmem [#allocation8], 64
        %v511 = vld [vmem:[%s510] sm:$0xff]
        %v512 = vld [vmem:[%s510 + $0x8] sm:$0xff]
        %v513 = vld [vmem:[%s510 + $0x10] sm:$0xff]
        %v514 = vld [vmem:[%s510 + $0x18] sm:$0xff]
        %s515 = scalar_lea.vmem %s4, 2
        %v516 = vld [vmem:[%s515] sm:$0x1]
        %v518 = vperm.slane %v516, 0
        %v521 = vsel %vm451, %v509, 0
        %523 = vmatpush.msra.mxu0 0.0
        %524 = vmatpush.msra.mxu0 0.0
        %525 = vmatpush.msra.mxu0 0.0
        %526 = vmatpush.msra.mxu0 0.0
        %527 = vmatpush.msra.mxu0 0.0
        %528 = vmatpush.msra.mxu0 0.0
        %529 = vmatpush.msra.mxu0 0.0
        %530 = vmatpush.msra.mxu0 0.0
        %531 = vmatpush.msra.mxu0 0.0
        %532 = vmatpush.msra.mxu0 0.0
        %533 = vmatpush.msra.mxu0 0.0
        %534 = vmatpush.msra.mxu0 0.0
        %535 = vmatpush.msra.mxu0 %v514
        %536 = vmatpush.msra.mxu0 %v513
        %537 = vmatpush.msra.mxu0 %v512
        %538 = vmatpush.msra.mxu0 %v511
        %539 = vmatmul.f32.gmra.mxu0 %v521
        %v540 = vpop.f32.mrf.mxu0
        %v541 = vadd.f32 %v518, %v540
        %542 = vdwg.mxu0
        %vm543 = vcmask 64512
        %v545 = vsel %vm543, %v473, 0
        %v548 = vsel %vm543, %v507, 0
        %550 = vmatpush.xpose.msra.mxu0 0.0
        %551 = vmatpush.xpose.msra.mxu0 0.0
        %552 = vmatpush.xpose.msra.mxu0 0.0
        %553 = vmatpush.xpose.msra.mxu0 0.0
        %554 = vmatpush.xpose.msra.mxu0 0.0
        %555 = vmatpush.xpose.msra.mxu0 0.0
        %556 = vmatpush.xpose.msra.mxu0 0.0
        %557 = vmatpush.xpose.msra.mxu0 0.0
        %558 = vmatpush.xpose.msra.mxu0 0.0
        %559 = vmatpush.xpose.msra.mxu0 0.0
        %560 = vmatpush.xpose.msra.mxu0 0.0
        %561 = vmatpush.xpose.msra.mxu0 0.0
        %562 = vmatpush.xpose.msra.mxu0 0.0
        %563 = vmatpush.xpose.msra.mxu0 0.0
        %564 = vmatpush.xpose.msra.mxu0 0.0
        %565 = vmatpush.xpose.msra.mxu0 %v548
        %566 = vmatmul.f32.gmra.mxu0 %v545
        %v567 = vpop.f32.mrf.mxu0
        %v568 = vadd.f32 0.0, %v567
        %569 = vdwg.mxu0
        %v570 = vsel %vm543, %v568, -inf
        %571 = vmax.xlane.f32.xlu0 %v570
        %v572 = vpop.xlane.xlu0 %571
        %v573 = vsub.f32 %v568, %v572
        %v574 = vmul.f32 %v573, 1.442695
        %v575 = vpow.pop %v574
        %v576 = vsel %vm543, %v575, 0.0
        %577 = vadd.xlane.f32.xlu0 %v576
        %v578 = vpop.xlane.xlu0 %577
        %v579 = vrcp.pop %v578
        %v580 = vmul.f32 %v578, %v579
        %v581 = vsub.f32 2.0, %v580
        %v582 = vmul.f32 %v579, %v581
        %v583 = vmul.f32 %v575, %v582
        %584 = vst.msk [vmem:[%s441] sm:$0xff] %vm543, %v583
        %v586 = vsel %vm543, %v583, 0
        %588 = vmatpush.msra.mxu0 0.0
        %589 = vmatpush.msra.mxu0 0.0
        %590 = vmatpush.msra.mxu0 0.0
        %591 = vmatpush.msra.mxu0 0.0
        %592 = vmatpush.msra.mxu0 0.0
        %593 = vmatpush.msra.mxu0 0.0
        %594 = vmatpush.msra.mxu0 0.0
        %595 = vmatpush.msra.mxu0 0.0
        %596 = vmatpush.msra.mxu0 0.0
        %597 = vmatpush.msra.mxu0 0.0
        %598 = vmatpush.msra.mxu0 0.0
        %599 = vmatpush.msra.mxu0 0.0
        %600 = vmatpush.msra.mxu0 0.0
        %601 = vmatpush.msra.mxu0 0.0
        %602 = vmatpush.msra.mxu0 0.0
        %603 = vmatpush.msra.mxu0 %v541
        %604 = vmatmul.f32.gmra.mxu0 %v586
        %v605 = vpop.f32.mrf.mxu0
        %v606 = vadd.f32 0.0, %v605
        %607 = vdwg.mxu0
        %608 = vrot.lane.b32.xlu0 %v473, 120
        %v609 = vpop.permute.xlu0 %608
        %610 = vrot.lane.b32.xlu0 %v507, 120
        %v611 = vpop.permute.xlu0 %610
        %v612 = vsel %vm543, %v609, 0
        %v614 = vsel %vm543, %v611, 0
        %616 = vmatpush.xpose.msra.mxu0 0.0
        %617 = vmatpush.xpose.msra.mxu0 0.0
        %618 = vmatpush.xpose.msra.mxu0 0.0
        %619 = vmatpush.xpose.msra.mxu0 0.0
        %620 = vmatpush.xpose.msra.mxu0 0.0
        %621 = vmatpush.xpose.msra.mxu0 0.0
        %622 = vmatpush.xpose.msra.mxu0 0.0
        %623 = vmatpush.xpose.msra.mxu0 0.0
        %624 = vmatpush.xpose.msra.mxu0 0.0
        %625 = vmatpush.xpose.msra.mxu0 0.0
        %626 = vmatpush.xpose.msra.mxu0 0.0
        %627 = vmatpush.xpose.msra.mxu0 0.0
        %628 = vmatpush.xpose.msra.mxu0 0.0
        %629 = vmatpush.xpose.msra.mxu0 0.0
        %630 = vmatpush.xpose.msra.mxu0 0.0
        %631 = vmatpush.xpose.msra.mxu0 %v614
        %632 = vmatmul.f32.gmra.mxu0 %v612
        %v633 = vpop.f32.mrf.mxu0
        %v634 = vadd.f32 0.0, %v633
        %635 = vdwg.mxu0
        %v636 = vsel %vm543, %v634, -inf
        %637 = vmax.xlane.f32.xlu0 %v636
        %v638 = vpop.xlane.xlu0 %637
        %v639 = vsub.f32 %v634, %v638
        %v640 = vmul.f32 %v639, 1.442695
        %v641 = vpow.pop %v640
        %v642 = vsel %vm543, %v641, 0.0
        %643 = vadd.xlane.f32.xlu0 %v642
        %v644 = vpop.xlane.xlu0 %643
        %v645 = vrcp.pop %v644
        %v646 = vmul.f32 %v644, %v645
        %v647 = vsub.f32 2.0, %v646
        %v648 = vmul.f32 %v645, %v647
        %v649 = vmul.f32 %v641, %v648
        %s650 = scalar_lea.vmem %s441, 8 [#allocation12]
        %651 = vst.msk [vmem:[%s650] sm:$0xff] %vm543, %v649
        %653 = vrot.lane.b32.xlu0 %v541, 120
        %v654 = vpop.permute.xlu0 %653
        %v657 = vsel %vm543, %v649, 0
        %659 = vmatpush.msra.mxu0 0.0
        %660 = vmatpush.msra.mxu0 0.0
        %661 = vmatpush.msra.mxu0 0.0
        %662 = vmatpush.msra.mxu0 0.0
        %663 = vmatpush.msra.mxu0 0.0
        %664 = vmatpush.msra.mxu0 0.0
        %665 = vmatpush.msra.mxu0 0.0
        %666 = vmatpush.msra.mxu0 0.0
        %667 = vmatpush.msra.mxu0 0.0
        %668 = vmatpush.msra.mxu0 0.0
        %669 = vmatpush.msra.mxu0 0.0
        %670 = vmatpush.msra.mxu0 0.0
        %671 = vmatpush.msra.mxu0 0.0
        %672 = vmatpush.msra.mxu0 0.0
        %673 = vmatpush.msra.mxu0 0.0
        %674 = vmatpush.msra.mxu0 %v654
        %675 = vmatmul.f32.gmra.mxu0 %v657
        %v676 = vpop.f32.mrf.mxu0
        %v677 = vadd.f32 0.0, %v676
        %678 = vdwg.mxu0
        %679 = vrot.lane.b32.xlu0 %v473, 112
        %v680 = vpop.permute.xlu0 %679
        %681 = vrot.lane.b32.xlu0 %v507, 112
        %v682 = vpop.permute.xlu0 %681
        %v683 = vsel %vm543, %v680, 0
        %v685 = vsel %vm543, %v682, 0
        %687 = vmatpush.xpose.msra.mxu0 0.0
        %688 = vmatpush.xpose.msra.mxu0 0.0
        %689 = vmatpush.xpose.msra.mxu0 0.0
        %690 = vmatpush.xpose.msra.mxu0 0.0
        %691 = vmatpush.xpose.msra.mxu0 0.0
        %692 = vmatpush.xpose.msra.mxu0 0.0
        %693 = vmatpush.xpose.msra.mxu0 0.0
        %694 = vmatpush.xpose.msra.mxu0 0.0
        %695 = vmatpush.xpose.msra.mxu0 0.0
        %696 = vmatpush.xpose.msra.mxu0 0.0
        %697 = vmatpush.xpose.msra.mxu0 0.0
        %698 = vmatpush.xpose.msra.mxu0 0.0
        %699 = vmatpush.xpose.msra.mxu0 0.0
        %700 = vmatpush.xpose.msra.mxu0 0.0
        %701 = vmatpush.xpose.msra.mxu0 0.0
        %702 = vmatpush.xpose.msra.mxu0 %v685
        %703 = vmatmul.f32.gmra.mxu0 %v683
        %v704 = vpop.f32.mrf.mxu0
        %v705 = vadd.f32 0.0, %v704
        %706 = vdwg.mxu0
        %v707 = vsel %vm543, %v705, -inf
        %708 = vmax.xlane.f32.xlu0 %v707
        %v709 = vpop.xlane.xlu0 %708
        %v710 = vsub.f32 %v705, %v709
        %v711 = vmul.f32 %v710, 1.442695
        %v712 = vpow.pop %v711
        %v713 = vsel %vm543, %v712, 0.0
        %714 = vadd.xlane.f32.xlu0 %v713
        %v715 = vpop.xlane.xlu0 %714
        %v716 = vrcp.pop %v715
        %v717 = vmul.f32 %v715, %v716
        %v718 = vsub.f32 2.0, %v717
        %v719 = vmul.f32 %v716, %v718
        %v720 = vmul.f32 %v712, %v719
        %s721 = scalar_lea.vmem %s441, 16 [#allocation12]
        %722 = vst.msk [vmem:[%s721] sm:$0xff] %vm543, %v720
        %723 = vrot.lane.b32.xlu0 %v541, 112
        %v724 = vpop.permute.xlu0 %723
        %v727 = vsel %vm543, %v720, 0
        %729 = vmatpush.msra.mxu0 0.0
        %730 = vmatpush.msra.mxu0 0.0
        %731 = vmatpush.msra.mxu0 0.0
        %732 = vmatpush.msra.mxu0 0.0
        %733 = vmatpush.msra.mxu0 0.0
        %734 = vmatpush.msra.mxu0 0.0
        %735 = vmatpush.msra.mxu0 0.0
        %736 = vmatpush.msra.mxu0 0.0
        %737 = vmatpush.msra.mxu0 0.0
        %738 = vmatpush.msra.mxu0 0.0
        %739 = vmatpush.msra.mxu0 0.0
        %740 = vmatpush.msra.mxu0 0.0
        %741 = vmatpush.msra.mxu0 0.0
        %742 = vmatpush.msra.mxu0 0.0
        %743 = vmatpush.msra.mxu0 0.0
        %744 = vmatpush.msra.mxu0 %v724
        %745 = vmatmul.f32.gmra.mxu0 %v727
        %v746 = vpop.f32.mrf.mxu0
        %v747 = vadd.f32 0.0, %v746
        %748 = vdwg.mxu0
        %749 = vrot.lane.b32.xlu0 %v473, 104
        %v750 = vpop.permute.xlu0 %749
        %751 = vrot.lane.b32.xlu0 %v507, 104
        %v752 = vpop.permute.xlu0 %751
        %v753 = vsel %vm543, %v750, 0
        %v755 = vsel %vm543, %v752, 0
        %757 = vmatpush.xpose.msra.mxu0 0.0
        %758 = vmatpush.xpose.msra.mxu0 0.0
        %759 = vmatpush.xpose.msra.mxu0 0.0
        %760 = vmatpush.xpose.msra.mxu0 0.0
        %761 = vmatpush.xpose.msra.mxu0 0.0
        %762 = vmatpush.xpose.msra.mxu0 0.0
        %763 = vmatpush.xpose.msra.mxu0 0.0
        %764 = vmatpush.xpose.msra.mxu0 0.0
        %765 = vmatpush.xpose.msra.mxu0 0.0
        %766 = vmatpush.xpose.msra.mxu0 0.0
        %767 = vmatpush.xpose.msra.mxu0 0.0
        %768 = vmatpush.xpose.msra.mxu0 0.0
        %769 = vmatpush.xpose.msra.mxu0 0.0
        %770 = vmatpush.xpose.msra.mxu0 0.0
        %771 = vmatpush.xpose.msra.mxu0 0.0
        %772 = vmatpush.xpose.msra.mxu0 %v755
        %773 = vmatmul.f32.gmra.mxu0 %v753
        %v774 = vpop.f32.mrf.mxu0
        %v775 = vadd.f32 0.0, %v774
        %776 = vdwg.mxu0
        %v777 = vsel %vm543, %v775, -inf
        %778 = vmax.xlane.f32.xlu0 %v777
        %v779 = vpop.xlane.xlu0 %778
        %v780 = vsub.f32 %v775, %v779
        %v781 = vmul.f32 %v780, 1.442695
        %v782 = vpow.pop %v781
        %v783 = vsel %vm543, %v782, 0.0
        %784 = vadd.xlane.f32.xlu0 %v783
        %v785 = vpop.xlane.xlu0 %784
        %v786 = vrcp.pop %v785
        %v787 = vmul.f32 %v785, %v786
        %v788 = vsub.f32 2.0, %v787
        %v789 = vmul.f32 %v786, %v788
        %v790 = vmul.f32 %v782, %v789
        %s791 = scalar_lea.vmem %s441, 24 [#allocation12]
        %792 = vst.msk [vmem:[%s791] sm:$0xff] %vm543, %v790
        %793 = vrot.lane.b32.xlu0 %v541, 104
        %v794 = vpop.permute.xlu0 %793
        %v797 = vsel %vm543, %v790, 0
        %799 = vmatpush.msra.mxu0 0.0
        %800 = vmatpush.msra.mxu0 0.0
        %801 = vmatpush.msra.mxu0 0.0
        %802 = vmatpush.msra.mxu0 0.0
        %803 = vmatpush.msra.mxu0 0.0
        %804 = vmatpush.msra.mxu0 0.0
        %805 = vmatpush.msra.mxu0 0.0
        %806 = vmatpush.msra.mxu0 0.0
        %807 = vmatpush.msra.mxu0 0.0
        %808 = vmatpush.msra.mxu0 0.0
        %809 = vmatpush.msra.mxu0 0.0
        %810 = vmatpush.msra.mxu0 0.0
        %811 = vmatpush.msra.mxu0 0.0
        %812 = vmatpush.msra.mxu0 0.0
        %813 = vmatpush.msra.mxu0 0.0
        %814 = vmatpush.msra.mxu0 %v794
        %815 = vmatmul.f32.gmra.mxu0 %v797
        %v816 = vpop.f32.mrf.mxu0
        %v817 = vadd.f32 0.0, %v816
        %818 = vdwg.mxu0
        %820 = vrot.lane.b32.xlu0 %v677, 8
        %v821 = vpop.permute.xlu0 %820
        %824 = vrot.lane.b32.xlu0 %v747, 16
        %v825 = vpop.permute.xlu0 %824
        %828 = vrot.lane.b32.xlu0 %v817, 24
        %v829 = vpop.permute.xlu0 %828
        %v831 = vsel %vm543, %v606, %v821
        %vm832 = vcmask 130048
        %v833 = vsel %vm832, %v831, %v825
        %vm834 = vcmask 195584
        %v835 = vsel %vm834, %v833, %v829
        %v836 = vld [vmem:[#allocation10] sm:$0xff]
        %v837 = vld [vmem:[#allocation10 + $0x8] sm:$0xff]
        %v838 = vld [vmem:[#allocation10 + $0x10] sm:$0xff]
        %v839 = vld [vmem:[#allocation10 + $0x18] sm:$0xff]
        %v840 = vld [vmem:[%s6] sm:$0x1]
        %v842 = vperm.slane %v840, 0
        %v845 = vsel %vm451, %v835, 0
        %847 = vmatpush.msra.mxu0 0.0
        %848 = vmatpush.msra.mxu0 0.0
        %849 = vmatpush.msra.mxu0 0.0
        %850 = vmatpush.msra.mxu0 0.0
        %851 = vmatpush.msra.mxu0 0.0
        %852 = vmatpush.msra.mxu0 0.0
        %853 = vmatpush.msra.mxu0 0.0
        %854 = vmatpush.msra.mxu0 0.0
        %855 = vmatpush.msra.mxu0 0.0
        %856 = vmatpush.msra.mxu0 0.0
        %857 = vmatpush.msra.mxu0 0.0
        %858 = vmatpush.msra.mxu0 0.0
        %859 = vmatpush.msra.mxu0 %v839
        %860 = vmatpush.msra.mxu0 %v838
        %861 = vmatpush.msra.mxu0 %v837
        %862 = vmatpush.msra.mxu0 %v836
        %863 = vmatmul.f32.gmra.mxu0 %v845
        %v864 = vpop.f32.mrf.mxu0
        %v865 = vadd.f32 %v842, %v864
        %866 = vdwg.mxu0
        %867 = vst.msk [vmem:[%s434] sm:$0xff] %vm451, %v865
        %s868 = sand.u32 %s203, 1
        %s869 = scalar_lea.sflag [#allocation4], %s868
        %s870 = sand.u32 %s203, 1
        %s871 = smul.addr %s870, 8
        %s872 = scalar_lea.vmem [#allocation11], %s871
        %s873 = sand.u32 %s229, 1
        %s874 = scalar_lea.sflag [#allocation13], %s873
        %s875 = sand.u32 %s229, 1
        %s876 = smul.addr %s875, 32
        %s877 = scalar_lea.vmem [#allocation12], %s876
        // Predicated region
        $region69: #{tpu_custom_call.1} parent=47 // pred_check
          %p878 = pneg %p213
        $region70: #{tpu_custom_call.1} parent=47 // pred_check_branch
          %880 = sbr.rel (%p878) target = $region72
        $region71: #{tpu_custom_call.1} parent=47 // pred_region
          %882 = vsyncadd %s869, 0
          %s883 = smul.addr %s33, 8
          %s884 = scalar_lea.hbm %s7, %s883
          %s886 = sshll.u32 %s872, 4
          %s887 = int_to_ptr.vmem [resolvable:$true] %s886
          %s888 = sshll.u32 %s884, 4
          %s889 = int_to_ptr.hbm [resolvable:$true] %s888
          %891 = dma.vmem_to_hbm [thread:$0]  %s887, 128, %s889, %s869
        $region72: #{tpu_custom_call.1} parent=47 // pred_fallthru
          _
        // Predicated region
        $region73: #{tpu_custom_call.1} parent=47 // pred_check
          %p892 = pneg %p239
        $region74: #{tpu_custom_call.1} parent=47 // pred_check_branch
          %894 = sbr.rel (%p892) target = $region76
        $region75: #{tpu_custom_call.1} parent=47 // pred_region
          %896 = vsyncadd %s874, 0
          %s897 = smul.addr %s33, 4
          %s898 = smul.addr %s897, 8
          %s899 = scalar_lea.hbm %s8, %s898
          %s900 = sshll.u32 %s877, 4
          %s901 = int_to_ptr.vmem [resolvable:$true] %s900
          %s902 = sshll.u32 %s899, 4
          %s903 = int_to_ptr.hbm [resolvable:$true] %s902
          %908 = dma.vmem_to_hbm [thread:$0]  %s901, 512, %s903, %s874, 128, 128, 8
        $region76: #{tpu_custom_call.1} parent=47 // pred_fallthru
          _
      $region48: #{tpu_custom_call.1} parent=5 // pred_fallthru
        _
      %p909 = scmp.le.s32.totalorder 2, %s28
      // Predicated region
      $region77: #{tpu_custom_call.1} parent=5 // pred_check
        %p910 = pneg %p909
      $region78: #{tpu_custom_call.1} parent=5 // pred_check_branch
        %912 = sbr.rel (%p910) target = $region80
      $region79: #{tpu_custom_call.1} parent=5 // pred_region
        %s913 = ssub.s32 %s28, 2
        // Predicated region
        $region81: #{tpu_custom_call.1} parent=79 // pred_check
          %p914 = pneg %p219
        $region82: #{tpu_custom_call.1} parent=79 // pred_check_branch
          %916 = sbr.rel (%p914) target = $region84
        $region83: #{tpu_custom_call.1} parent=79 // pred_region
          %s917 = sand.u32 %s204, 1
          %s918 = scalar_lea.sflag [#allocation4], %s917
          %s919 = sand.u32 %s204, 1
          %s920 = smul.addr %s919, 8
          %s921 = scalar_lea.vmem [#allocation11], %s920
          %923 = dma.done %s918, 128
        $region84: #{tpu_custom_call.1} parent=79 // pred_fallthru
          _
        // Predicated region
        $region85: #{tpu_custom_call.1} parent=79 // pred_check
          %p924 = pneg %p245
        $region86: #{tpu_custom_call.1} parent=79 // pred_check_branch
          %926 = sbr.rel (%p924) target = $region88
        $region87: #{tpu_custom_call.1} parent=79 // pred_region
          %s927 = sand.u32 %s230, 1
          %s928 = scalar_lea.sflag [#allocation13], %s927
          %s929 = sand.u32 %s230, 1
          %s930 = smul.addr %s929, 32
          %s931 = scalar_lea.vmem [#allocation12], %s930
          %933 = dma.done %s928, 512
        $region88: #{tpu_custom_call.1} parent=79 // pred_fallthru
          _
      $region80: #{tpu_custom_call.1} parent=5 // pred_fallthru
        _
    $region6: #{tpu_custom_call.1} parent=1 // loop_footer
      %s32 = sadd.s32 1, %s28
    $region7: #{tpu_custom_call.1} parent=1 // loop_footer_branch
      %27 = sbr.rel target = $region3
    $region8: #{tpu_custom_call.1} parent=1 // loop_exit
      _
    %934 = vsyncpa [#allocation3], 1
    %s935 = scalar_lea.sflag [#allocation3], 1
    %936 = vsyncpa %s935, 1
    %937 = vsyncpa [#allocation6], 1
    %s938 = scalar_lea.sflag [#allocation6], 1
    %939 = vsyncpa %s938, 1
    %940 = vsyncpa [#allocation9], 1
    %941 = vsyncpa [#allocation4], 1
    %s942 = scalar_lea.sflag [#allocation4], 1
    %943 = vsyncpa %s942, 1
    %944 = vsyncpa [#allocation13], 1
    %s945 = scalar_lea.sflag [#allocation13], 1
    %946 = vsyncpa %s945, 1

// kernel: tpu_custom_call.1
$region0: #{tpu_custom_call.1}
  #allocation0 [shape = 'u32[]', space=smem, size = 0x4, offset = 0x4, fixed_abs, tag = 'smem constant byte address 0x4 - core index']
  #allocation1 [shape = 'u32[72,128]{1,0:T(1,128)}', space=vmem, size = 0x9000, scoped, tag = 'internal scratch']
  %s0 = inlined_call_operand.hbm [shape: f32[2,8,32], index: 0, kind: input, shape index: {}]
  %s1 = inlined_call_operand.hbm [shape: f32[2,8,32], index: 1, kind: input, shape index: {}]
  %s2 = inlined_call_operand.hbm [shape: f32[2,8,32], index: 2, kind: input, shape index: {}]
  %s3 = inlined_call_operand.hbm [shape: f32[3,32,32], index: 3, kind: input, shape index: {}]
  %s4 = inlined_call_operand.vmem [shape: f32[3,1,32], index: 4, kind: input, shape index: {}]
  %s5 = inlined_call_operand.hbm [shape: f32[32,32], index: 5, kind: input, shape index: {}]
  %s6 = inlined_call_operand.vmem [shape: f32[1,32], index: 6, kind: input, shape index: {}]
  %s7 = inlined_call_operand.hbm [shape: f32[2,8,32], index: 7, kind: output, shape index: {0}]
  %s8 = inlined_call_operand.hbm [shape: f32[2,4,8,8], index: 8, kind: output, shape index: {1}]
  %9 = xla_tuple %s7, %s8
  %s10 = sld [smem:[#allocation0]]
  $region89: #{tpu_custom_call.1} parent=0
    _
  %s12 = ssub.s32 1, %s10
  %s13 = scalar_select 0, %s12, %s10
  $region1: #{tpu_custom_call.1} parent=0
    #allocation2 [shape = 'u8[8192]{0}', space=vmem, size = 0x2000, scoped, tag = 'input window, operand 0']
    #allocation3 [shape = 's32[2]{0}', space=sflag, size = 0x8, scoped, tag = 'scoped memory for tpu_custom_call.1']
    #allocation4 [shape = 's32[2]{0}', space=sflag, size = 0x8, scoped, tag = 'scoped memory for tpu_custom_call.1']
    #allocation5 [shape = 'u8[8192]{0}', space=vmem, size = 0x2000, scoped, tag = 'input window, operand 1']
    #allocation6 [shape = 's32[2]{0}', space=sflag, size = 0x8, scoped, tag = 'scoped memory for tpu_custom_call.1']
    #allocation7 [shape = 'u8[8192]{0}', space=vmem, size = 0x2000, scoped, tag = 'input window, operand 2']
    #allocation8 [shape = 'u8[49152]{0}', space=vmem, size = 0xc000, scoped, tag = 'input window, operand 3, single buffered']
    #allocation9 [shape = 's32[1]{0}', space=sflag, size = 0x4, scoped, tag = 'scoped memory for tpu_custom_call.1']
    #allocation10 [shape = 'u8[16384]{0}', space=vmem, size = 0x4000, scoped, tag = 'input window, operand 5, single buffered']
    #allocation11 [shape = 'u8[8192]{0}', space=vmem, size = 0x2000, scoped, tag = 'output window, operand 0']
    #allocation12 [shape = 'u8[32768]{0}', space=vmem, size = 0x8000, scoped, tag = 'output window, operand 1']
    #allocation13 [shape = 's32[2]{0}', space=sflag, size = 0x8, scoped, tag = 'scoped memory for tpu_custom_call.1']
    %14 = vsyncpa [#allocation3], 0
    %s15 = scalar_lea.sflag [#allocation3], 1
    %16 = vsyncpa %s15, 0
    %17 = vsyncpa [#allocation6], 0
    %s18 = scalar_lea.sflag [#allocation6], 1
    %19 = vsyncpa %s18, 0
    %20 = vsyncpa [#allocation9], 0
    %21 = vsyncpa [#allocation4], 0
    %s22 = scalar_lea.sflag [#allocation4], 1
    %23 = vsyncpa %s22, 0
    %24 = vsyncpa [#allocation13], 0
    %s25 = scalar_lea.sflag [#allocation13], 1
    %26 = vsyncpa %s25, 0
    loop: start=0, step=1, limit=4
    $region2: #{tpu_custom_call.1} parent=1 // loop_pre_header
      _
    $region3: #{tpu_custom_call.1} parent=1 // loop_header
      %s28 = sphi 0, %s32
      %p29 = scmp.ge.s32.totalorder %s28, 4
      %s38 = sphi 0, %s40
      %s41 = sphi 0, %s38
      %s42 = sphi 0, %s41
      %s58 = sphi 0, %s42
      %s64 = sphi 0, %s66
      %s67 = sphi 0, %s64
      %s68 = sphi 0, %s67
      %s84 = sphi 0, %s68
      %s90 = sphi 0, %s92
      %s93 = sphi 0, %s90
      %s94 = sphi 0, %s93
      %s110 = sphi 0, %s94
      %s114 = sphi 0, %s114
      %s116 = sphi 0, %s114
      %s117 = sphi 0, %s116
      %s131 = sphi 0, %s117
      %s135 = sphi 0, %s135
      %s137 = sphi 0, %s135
      %s138 = sphi 0, %s137
      %s152 = sphi 0, %s138
      %s156 = sphi 0, %s156
      %s158 = sphi 0, %s156
      %s159 = sphi 0, %s158
      %s173 = sphi 0, %s159
      %s177 = sphi 0, %s177
      %s179 = sphi 0, %s177
      %s180 = sphi 0, %s179
      %s194 = sphi 0, %s180
      %s200 = sphi 0, %s202
      %s203 = sphi 0, %s200
      %s204 = sphi 0, %s203
      %s220 = sphi 0, %s204
      %s226 = sphi 0, %s228
      %s229 = sphi 0, %s226
      %s230 = sphi 0, %s229
      %s246 = sphi 0, %s230
    $region4: #{tpu_custom_call.1} parent=1 // loop_header_branch
      %31 = sbr.rel (%p29) target = $region8
    $region5: #{tpu_custom_call.1} parent=1 // loop_body
      %s33 = ssub.s32 %s28, 1
      %s34 = ssub.s32 %s28, 2
      %s35 = sadd.s32 %s28, 1
      %s36 = ssub.s32 %s28, %s35
      %p37 = scmp.eq.s32.totalorder %s36, 0
      %s39 = sadd.s32 %s38, 1
      %s40 = scalar_select %p37, %s38, %s39
      %p43 = pneg %p37
      %p44 = scmp.eq.s32.totalorder %s28, 1
      %p45 = por %p43, %p44
      %p46 = scmp.ne.s32.totalorder %s38, %s41
      %p47 = scmp.eq.s32.totalorder %s28, 0
      %p48 = por %p46, %p47
      %p49 = scmp.ne.s32.totalorder %s38, %s41
      %p50 = scmp.eq.s32.totalorder %s33, 1
      %p51 = por %p49, %p50
      %p52 = scmp.ne.s32.totalorder %s41, %s42
      %p53 = scmp.eq.s32.totalorder %s33, 0
      %p54 = por %p52, %p53
      %p55 = scmp.ne.s32.totalorder %s41, %s42
      %p56 = scmp.eq.s32.totalorder %s34, 1
      %p57 = por %p55, %p56
      %p59 = scmp.ne.s32.totalorder %s42, %s58
      %p60 = scmp.eq.s32.totalorder %s34, 0
      %p61 = por %p59, %p60
      %s62 = ssub.s32 %s28, %s35
      %p63 = scmp.eq.s32.totalorder %s62, 0
      %s65 = sadd.s32 %s64, 1
      %s66 = scalar_select %p63, %s64, %s65
      %p69 = pneg %p63
      %p70 = scmp.eq.s32.totalorder %s28, 1
      %p71 = por %p69, %p70
      %p72 = scmp.ne.s32.totalorder %s64, %s67
      %p73 = scmp.eq.s32.totalorder %s28, 0
      %p74 = por %p72, %p73
      %p75 = scmp.ne.s32.totalorder %s64, %s67
      %p76 = scmp.eq.s32.totalorder %s33, 1
      %p77 = por %p75, %p76
      %p78 = scmp.ne.s32.totalorder %s67, %s68
      %p79 = scmp.eq.s32.totalorder %s33, 0
      %p80 = por %p78, %p79
      %p81 = scmp.ne.s32.totalorder %s67, %s68
      %p82 = scmp.eq.s32.totalorder %s34, 1
      %p83 = por %p81, %p82
      %p85 = scmp.ne.s32.totalorder %s68, %s84
      %p86 = scmp.eq.s32.totalorder %s34, 0
      %p87 = por %p85, %p86
      %s88 = ssub.s32 %s28, %s35
      %p89 = scmp.eq.s32.totalorder %s88, 0
      %s91 = sadd.s32 %s90, 1
      %s92 = scalar_select %p89, %s90, %s91
      %p95 = pneg %p89
      %p96 = scmp.eq.s32.totalorder %s28, 1
      %p97 = por %p95, %p96
      %p98 = scmp.ne.s32.totalorder %s90, %s93
      %p99 = scmp.eq.s32.totalorder %s28, 0
      %p100 = por %p98, %p99
      %p101 = scmp.ne.s32.totalorder %s90, %s93
      %p102 = scmp.eq.s32.totalorder %s33, 1
      %p103 = por %p101, %p102
      %p104 = scmp.ne.s32.totalorder %s93, %s94
      %p105 = scmp.eq.s32.totalorder %s33, 0
      %p106 = por %p104, %p105
      %p107 = scmp.ne.s32.totalorder %s93, %s94
      %p108 = scmp.eq.s32.totalorder %s34, 1
      %p109 = por %p107, %p108
      %p111 = scmp.ne.s32.totalorder %s94, %s110
      %p112 = scmp.eq.s32.totalorder %s34, 0
      %p113 = por %p111, %p112
      %s115 = sadd.s32 %s114, 1
      %p118 = scmp.eq.s32.totalorder %s28, 1
      %p119 = scmp.ne.s32.totalorder %s114, %s116
      %p120 = scmp.eq.s32.totalorder %s28, 0
      %p121 = por %p119, %p120
      %p122 = scmp.ne.s32.totalorder %s114, %s116
      %p123 = scmp.eq.s32.totalorder %s33, 1
      %p124 = por %p122, %p123
      %p125 = scmp.ne.s32.totalorder %s116, %s117
      %p126 = scmp.eq.s32.totalorder %s33, 0
      %p127 = por %p125, %p126
      %p128 = scmp.ne.s32.totalorder %s116, %s117
      %p129 = scmp.eq.s32.totalorder %s34, 1
      %p130 = por %p128, %p129
      %p132 = scmp.ne.s32.totalorder %s117, %s131
      %p133 = scmp.eq.s32.totalorder %s34, 0
      %p134 = por %p132, %p133
      %s136 = sadd.s32 %s135, 1
      %p139 = scmp.eq.s32.totalorder %s28, 1
      %p140 = scmp.ne.s32.totalorder %s135, %s137
      %p141 = scmp.eq.s32.totalorder %s28, 0
      %p142 = por %p140, %p141
      %p143 = scmp.ne.s32.totalorder %s135, %s137
      %p144 = scmp.eq.s32.totalorder %s33, 1
      %p145 = por %p143, %p144
      %p146 = scmp.ne.s32.totalorder %s137, %s138
      %p147 = scmp.eq.s32.totalorder %s33, 0
      %p148 = por %p146, %p147
      %p149 = scmp.ne.s32.totalorder %s137, %s138
      %p150 = scmp.eq.s32.totalorder %s34, 1
      %p151 = por %p149, %p150
      %p153 = scmp.ne.s32.totalorder %s138, %s152
      %p154 = scmp.eq.s32.totalorder %s34, 0
      %p155 = por %p153, %p154
      %s157 = sadd.s32 %s156, 1
      %p160 = scmp.eq.s32.totalorder %s28, 1
      %p161 = scmp.ne.s32.totalorder %s156, %s158
      %p162 = scmp.eq.s32.totalorder %s28, 0
      %p163 = por %p161, %p162
      %p164 = scmp.ne.s32.totalorder %s156, %s158
      %p165 = scmp.eq.s32.totalorder %s33, 1
      %p166 = por %p164, %p165
      %p167 = scmp.ne.s32.totalorder %s158, %s159
      %p168 = scmp.eq.s32.totalorder %s33, 0
      %p169 = por %p167, %p168
      %p170 = scmp.ne.s32.totalorder %s158, %s159
      %p171 = scmp.eq.s32.totalorder %s34, 1
      %p172 = por %p170, %p171
      %p174 = scmp.ne.s32.totalorder %s159, %s173
      %p175 = scmp.eq.s32.totalorder %s34, 0
      %p176 = por %p174, %p175
      %s178 = sadd.s32 %s177, 1
      %p181 = scmp.eq.s32.totalorder %s28, 1
      %p182 = scmp.ne.s32.totalorder %s177, %s179
      %p183 = scmp.eq.s32.totalorder %s28, 0
      %p184 = por %p182, %p183
      %p185 = scmp.ne.s32.totalorder %s177, %s179
      %p186 = scmp.eq.s32.totalorder %s33, 1
      %p187 = por %p185, %p186
      %p188 = scmp.ne.s32.totalorder %s179, %s180
      %p189 = scmp.eq.s32.totalorder %s33, 0
      %p190 = por %p188, %p189
      %p191 = scmp.ne.s32.totalorder %s179, %s180
      %p192 = scmp.eq.s32.totalorder %s34, 1
      %p193 = por %p191, %p192
      %p195 = scmp.ne.s32.totalorder %s180, %s194
      %p196 = scmp.eq.s32.totalorder %s34, 0
      %p197 = por %p195, %p196
      %s198 = ssub.s32 %s28, %s35
      %p199 = scmp.eq.s32.totalorder %s198, 0
      %s201 = sadd.s32 %s200, 1
      %s202 = scalar_select %p199, %s200, %s201
      %p205 = pneg %p199
      %p206 = scmp.eq.s32.totalorder %s28, 1
      %p207 = por %p205, %p206
      %p208 = scmp.ne.s32.totalorder %s200, %s203
      %p209 = scmp.eq.s32.totalorder %s28, 0
      %p210 = por %p208, %p209
      %p211 = scmp.ne.s32.totalorder %s200, %s203
      %p212 = scmp.eq.s32.totalorder %s33, 1
      %p213 = por %p211, %p212
      %p214 = scmp.ne.s32.totalorder %s203, %s204
      %p215 = scmp.eq.s32.totalorder %s33, 0
      %p216 = por %p214, %p215
      %p217 = scmp.ne.s32.totalorder %s203, %s204
      %p218 = scmp.eq.s32.totalorder %s34, 1
      %p219 = por %p217, %p218
      %p221 = scmp.ne.s32.totalorder %s204, %s220
      %p222 = scmp.eq.s32.totalorder %s34, 0
      %p223 = por %p221, %p222
      %s224 = ssub.s32 %s28, %s35
      %p225 = scmp.eq.s32.totalorder %s224, 0
      %s227 = sadd.s32 %s226, 1
      %s228 = scalar_select %p225, %s226, %s227
      %p231 = pneg %p225
      %p232 = scmp.eq.s32.totalorder %s28, 1
      %p233 = por %p231, %p232
      %p234 = scmp.ne.s32.totalorder %s226, %s229
      %p235 = scmp.eq.s32.totalorder %s28, 0
      %p236 = por %p234, %p235
      %p237 = scmp.ne.s32.totalorder %s226, %s229
      %p238 = scmp.eq.s32.totalorder %s33, 1
      %p239 = por %p237, %p238
      %p240 = scmp.ne.s32.totalorder %s229, %s230
      %p241 = scmp.eq.s32.totalorder %s33, 0
      %p242 = por %p240, %p241
      %p243 = scmp.ne.s32.totalorder %s229, %s230
      %p244 = scmp.eq.s32.totalorder %s34, 1
      %p245 = por %p243, %p244
      %p247 = scmp.ne.s32.totalorder %s230, %s246
      %p248 = scmp.eq.s32.totalorder %s34, 0
      %p249 = por %p247, %p248
      %p250 = scmp.le.s32.totalorder 1, %s28
      %p251 = scmp.lt.s32.totalorder %s28, 3
      %p252 = pnand %p250, %p251
      %p253 = pneg %p252
      // Predicated region
      $region9: #{tpu_custom_call.1} parent=5 // pred_check
        _
      $region10: #{tpu_custom_call.1} parent=5 // pred_check_branch
        %255 = sbr.rel (%p252) target = $region12
      $region11: #{tpu_custom_call.1} parent=5 // pred_region
        %s256 = ssub.s32 %s28, 1
        // Predicated region
        $region13: #{tpu_custom_call.1} parent=11 // pred_check
          %p257 = pneg %p127
        $region14: #{tpu_custom_call.1} parent=11 // pred_check_branch
          %259 = sbr.rel (%p257) target = $region16
        $region15: #{tpu_custom_call.1} parent=11 // pred_region
          %261 = vsyncadd [#allocation9], 0
          %s262 = sshll.u32 %s3, 4
          %s263 = int_to_ptr.hbm [resolvable:$true] %s262
          %s264 = sshll.u32 [#allocation8], 4
          %s265 = int_to_ptr.vmem [resolvable:$true] %s264
          %270 = dma.hbm_to_vmem [thread:$0]  %s263, 1536, %s265, [#allocation9], 128, 128, 8
        $region16: #{tpu_custom_call.1} parent=11 // pred_fallthru
          _
        // Predicated region
        $region17: #{tpu_custom_call.1} parent=11 // pred_check
          %p271 = pneg %p148
        $region18: #{tpu_custom_call.1} parent=11 // pred_check_branch
          %273 = sbr.rel (%p271) target = $region20
        $region19: #{tpu_custom_call.1} parent=11 // pred_region
          _
        $region20: #{tpu_custom_call.1} parent=11 // pred_fallthru
          _
        // Predicated region
        $region21: #{tpu_custom_call.1} parent=11 // pred_check
          %p274 = pneg %p169
        $region22: #{tpu_custom_call.1} parent=11 // pred_check_branch
          %276 = sbr.rel (%p274) target = $region24
        $region23: #{tpu_custom_call.1} parent=11 // pred_region
          %278 = vsyncadd [#allocation9], 0
          %s279 = sshll.u32 %s5, 4
          %s280 = int_to_ptr.hbm [resolvable:$true] %s279
          %s281 = sshll.u32 [#allocation10], 4
          %s282 = int_to_ptr.vmem [resolvable:$true] %s281
          %287 = dma.hbm_to_vmem [thread:$0]  %s280, 512, %s282, [#allocation9], 128, 128, 8
        $region24: #{tpu_custom_call.1} parent=11 // pred_fallthru
          _
        // Predicated region
        $region25: #{tpu_custom_call.1} parent=11 // pred_check
          %p288 = pneg %p190
        $region26: #{tpu_custom_call.1} parent=11 // pred_check_branch
          %290 = sbr.rel (%p288) target = $region28
        $region27: #{tpu_custom_call.1} parent=11 // pred_region
          _
        $region28: #{tpu_custom_call.1} parent=11 // pred_fallthru
          _
      $region12: #{tpu_custom_call.1} parent=5 // pred_fallthru
        _
      %p291 = scmp.lt.s32.totalorder %s28, 2
      // Predicated region
      $region29: #{tpu_custom_call.1} parent=5 // pred_check
        %p292 = pneg %p291
      $region30: #{tpu_custom_call.1} parent=5 // pred_check_branch
        %294 = sbr.rel (%p292) target = $region32
      $region31: #{tpu_custom_call.1} parent=5 // pred_region
        // Predicated region
        $region33: #{tpu_custom_call.1} parent=31 // pred_check
          %p295 = pneg %p48
        $region34: #{tpu_custom_call.1} parent=31 // pred_check_branch
          %297 = sbr.rel (%p295) target = $region36
        $region35: #{tpu_custom_call.1} parent=31 // pred_region
          %s298 = sand.u32 %s38, 1
          %s299 = scalar_lea.sflag [#allocation3], %s298
          %s300 = sand.u32 %s38, 1
          %s301 = smul.addr %s300, 8
          %s302 = scalar_lea.vmem [#allocation2], %s301
          %304 = vsyncadd %s299, 0
          %s305 = smul.addr %s28, 8
          %s306 = scalar_lea.hbm %s0, %s305
          %s308 = sshll.u32 %s306, 4
          %s309 = int_to_ptr.hbm [resolvable:$true] %s308
          %s310 = sshll.u32 %s302, 4
          %s311 = int_to_ptr.vmem [resolvable:$true] %s310
          %313 = dma.hbm_to_vmem [thread:$0]  %s309, 128, %s311, %s299
        $region36: #{tpu_custom_call.1} parent=31 // pred_fallthru
          _
        // Predicated region
        $region37: #{tpu_custom_call.1} parent=31 // pred_check
          %p314 = pneg %p74
        $region38: #{tpu_custom_call.1} parent=31 // pred_check_branch
          %316 = sbr.rel (%p314) target = $region40
        $region39: #{tpu_custom_call.1} parent=31 // pred_region
          %s317 = sand.u32 %s28, 1
          %s318 = scalar_lea.sflag [#allocation6], %s317
          %s319 = sand.u32 %s64, 1
          %s320 = smul.addr %s319, 8
          %s321 = scalar_lea.vmem [#allocation5], %s320
          %323 = vsyncadd %s318, 0
          %s324 = smul.addr %s28, 8
          %s325 = scalar_lea.hbm %s1, %s324
          %s327 = sshll.u32 %s325, 4
          %s328 = int_to_ptr.hbm [resolvable:$true] %s327
          %s329 = sshll.u32 %s321, 4
          %s330 = int_to_ptr.vmem [resolvable:$true] %s329
          %332 = dma.hbm_to_vmem [thread:$0]  %s328, 128, %s330, %s318
        $region40: #{tpu_custom_call.1} parent=31 // pred_fallthru
          _
        // Predicated region
        $region41: #{tpu_custom_call.1} parent=31 // pred_check
          %p333 = pneg %p100
        $region42: #{tpu_custom_call.1} parent=31 // pred_check_branch
          %335 = sbr.rel (%p333) target = $region44
        $region43: #{tpu_custom_call.1} parent=31 // pred_region
          %s336 = sand.u32 %s28, 1
          %s337 = scalar_lea.sflag [#allocation6], %s336
          %s338 = sand.u32 %s90, 1
          %s339 = smul.addr %s338, 8
          %s340 = scalar_lea.vmem [#allocation7], %s339
          %342 = vsyncadd %s337, 0
          %s343 = smul.addr %s28, 8
          %s344 = scalar_lea.hbm %s2, %s343
          %s346 = sshll.u32 %s344, 4
          %s347 = int_to_ptr.hbm [resolvable:$true] %s346
          %s348 = sshll.u32 %s340, 4
          %s349 = int_to_ptr.vmem [resolvable:$true] %s348
          %351 = dma.hbm_to_vmem [thread:$0]  %s347, 128, %s349, %s337
        $region44: #{tpu_custom_call.1} parent=31 // pred_fallthru
          _
      $region32: #{tpu_custom_call.1} parent=5 // pred_fallthru
        _
      %p352 = scmp.le.s32.totalorder 1, %s28
      %p353 = scmp.lt.s32.totalorder %s28, 3
      %p354 = pnand %p352, %p353
      %p355 = pneg %p354
      // Predicated region
      $region45: #{tpu_custom_call.1} parent=5 // pred_check
        _
      $region46: #{tpu_custom_call.1} parent=5 // pred_check_branch
        %357 = sbr.rel (%p354) target = $region48
      $region47: #{tpu_custom_call.1} parent=5 // pred_region
        %s358 = ssub.s32 %s28, 1
        %s359 = sand.u32 %s41, 1
        %s360 = scalar_lea.sflag [#allocation3], %s359
        %s361 = sand.u32 %s41, 1
        %s362 = smul.addr %s361, 8
        %s363 = scalar_lea.vmem [#allocation2], %s362
        // Predicated region
        $region49: #{tpu_custom_call.1} parent=47 // pred_check
          %p364 = pneg %p54
        $region50: #{tpu_custom_call.1} parent=47 // pred_check_branch
          %366 = sbr.rel (%p364) target = $region52
        $region51: #{tpu_custom_call.1} parent=47 // pred_region
          %368 = dma.done %s360, 128
        $region52: #{tpu_custom_call.1} parent=47 // pred_fallthru
          _
        %s369 = sand.u32 %s33, 1
        %s370 = scalar_lea.sflag [#allocation6], %s369
        %s371 = sand.u32 %s67, 1
        %s372 = smul.addr %s371, 8
        %s373 = scalar_lea.vmem [#allocation5], %s372
        // Predicated region
        $region53: #{tpu_custom_call.1} parent=47 // pred_check
          %p374 = pneg %p80
        $region54: #{tpu_custom_call.1} parent=47 // pred_check_branch
          %376 = sbr.rel (%p374) target = $region56
        $region55: #{tpu_custom_call.1} parent=47 // pred_region
          %378 = dma.done %s370, 128
        $region56: #{tpu_custom_call.1} parent=47 // pred_fallthru
          _
        %s379 = sand.u32 %s33, 1
        %s380 = scalar_lea.sflag [#allocation6], %s379
        %s381 = sand.u32 %s93, 1
        %s382 = smul.addr %s381, 8
        %s383 = scalar_lea.vmem [#allocation7], %s382
        // Predicated region
        $region57: #{tpu_custom_call.1} parent=47 // pred_check
          %p384 = pneg %p106
        $region58: #{tpu_custom_call.1} parent=47 // pred_check_branch
          %386 = sbr.rel (%p384) target = $region60
        $region59: #{tpu_custom_call.1} parent=47 // pred_region
          %388 = dma.done %s380, 128
        $region60: #{tpu_custom_call.1} parent=47 // pred_fallthru
          _
        // Predicated region
        $region61: #{tpu_custom_call.1} parent=47 // pred_check
          %p389 = pneg %p127
        $region62: #{tpu_custom_call.1} parent=47 // pred_check_branch
          %391 = sbr.rel (%p389) target = $region64
        $region63: #{tpu_custom_call.1} parent=47 // pred_region
          %393 = dma.done [#allocation9], 1536
        $region64: #{tpu_custom_call.1} parent=47 // pred_fallthru
          _
        // Predicated region
        $region65: #{tpu_custom_call.1} parent=47 // pred_check
          %p394 = pneg %p169
        $region66: #{tpu_custom_call.1} parent=47 // pred_check_branch
          %396 = sbr.rel (%p394) target = $region68
        $region67: #{tpu_custom_call.1} parent=47 // pred_region
          %398 = dma.done [#allocation9], 512
        $region68: #{tpu_custom_call.1} parent=47 // pred_fallthru
          _
        %s399 = sand.u32 %s41, 1
        %s400 = scalar_lea.sflag [#allocation3], %s399
        %s401 = sand.u32 %s41, 1
        %s402 = smul.addr %s401, 8
        %s403 = scalar_lea.vmem [#allocation2], %s402
        %p404 = pneg %p54
        %p405 = pneg %p51
        %s406 = sand.u32 %s33, 1
        %s407 = scalar_lea.sflag [#allocation6], %s406
        %s408 = sand.u32 %s67, 1
        %s409 = smul.addr %s408, 8
        %s410 = scalar_lea.vmem [#allocation5], %s409
        %p411 = pneg %p80
        %p412 = pneg %p77
        %s413 = sand.u32 %s33, 1
        %s414 = scalar_lea.sflag [#allocation6], %s413
        %s415 = sand.u32 %s93, 1
        %s416 = smul.addr %s415, 8
        %s417 = scalar_lea.vmem [#allocation7], %s416
        %p418 = pneg %p106
        %p419 = pneg %p103
        %p420 = pneg %p127
        %p421 = pneg %p124
        %p422 = pneg %p148
        %p423 = pneg %p145
        %p424 = pneg %p169
        %p425 = pneg %p166
        %p426 = pneg %p190
        %p427 = pneg %p187
        %p428 = pneg %p216
        %p429 = pneg %p213
        %s430 = sand.u32 %s203, 1
        %s431 = scalar_lea.sflag [#allocation4], %s430
        %s432 = sand.u32 %s203, 1
        %s433 = smul.addr %s432, 8
        %s434 = scalar_lea.vmem [#allocation11], %s433
        %p435 = pneg %p242
        %p436 = pneg %p239
        %s437 = sand.u32 %s229, 1
        %s438 = scalar_lea.sflag [#allocation13], %s437
        %s439 = sand.u32 %s229, 1
        %s440 = smul.addr %s439, 32
        %s441 = scalar_lea.vmem [#allocation12], %s440
        %v442 = vld [vmem:[%s363] sm:$0xff]
        %v443 = vld [vmem:[#allocation8] sm:$0xff]
        %v444 = vld [vmem:[#allocation8 + $0x8] sm:$0xff]
        %v445 = vld [vmem:[#allocation8 + $0x10] sm:$0xff]
        %v446 = vld [vmem:[#allocation8 + $0x18] sm:$0xff]
        %v447 = vld [vmem:[%s4] sm:$0x1]
        %v449 = vperm.slane %v447, 0
        %vm451 = vcmask 261120
        %v453 = vsel %vm451, %v442, 0
        %455 = vmatpush.msra.mxu0 0.0
        %456 = vmatpush.msra.mxu0 0.0
        %457 = vmatpush.msra.mxu0 0.0
        %458 = vmatpush.msra.mxu0 0.0
        %459 = vmatpush.msra.mxu0 0.0
        %460 = vmatpush.msra.mxu0 0.0
        %461 = vmatpush.msra.mxu0 0.0
        %462 = vmatpush.msra.mxu0 0.0
        %463 = vmatpush.msra.mxu0 0.0
        %464 = vmatpush.msra.mxu0 0.0
        %465 = vmatpush.msra.mxu0 0.0
        %466 = vmatpush.msra.mxu0 0.0
        %467 = vmatpush.msra.mxu0 %v446
        %468 = vmatpush.msra.mxu0 %v445
        %469 = vmatpush.msra.mxu0 %v444
        %470 = vmatpush.msra.mxu0 %v443
        %471 = vmatmul.f32.gmra.mxu0 %v453
        %v472 = vpop.f32.mrf.mxu0
        %v473 = vadd.f32 %v449, %v472
        %474 = vdwg.mxu0
        %v475 = vld [vmem:[%s373] sm:$0xff]
        %s476 = scalar_lea.vmem [#allocation8], 32
        %v477 = vld [vmem:[%s476] sm:$0xff]
        %v478 = vld [vmem:[%s476 + $0x8] sm:$0xff]
        %v479 = vld [vmem:[%s476 + $0x10] sm:$0xff]
        %v480 = vld [vmem:[%s476 + $0x18] sm:$0xff]
        %s481 = scalar_lea.vmem %s4, 1
        %v482 = vld [vmem:[%s481] sm:$0x1]
        %v484 = vperm.slane %v482, 0
        %v487 = vsel %vm451, %v475, 0
        %489 = vmatpush.msra.mxu0 0.0
        %490 = vmatpush.msra.mxu0 0.0
        %491 = vmatpush.msra.mxu0 0.0
        %492 = vmatpush.msra.mxu0 0.0
        %493 = vmatpush.msra.mxu0 0.0
        %494 = vmatpush.msra.mxu0 0.0
        %495 = vmatpush.msra.mxu0 0.0
        %496 = vmatpush.msra.mxu0 0.0
        %497 = vmatpush.msra.mxu0 0.0
        %498 = vmatpush.msra.mxu0 0.0
        %499 = vmatpush.msra.mxu0 0.0
        %500 = vmatpush.msra.mxu0 0.0
        %501 = vmatpush.msra.mxu0 %v480
        %502 = vmatpush.msra.mxu0 %v479
        %503 = vmatpush.msra.mxu0 %v478
        %504 = vmatpush.msra.mxu0 %v477
        %505 = vmatmul.f32.gmra.mxu0 %v487
        %v506 = vpop.f32.mrf.mxu0
        %v507 = vadd.f32 %v484, %v506
        %508 = vdwg.mxu0
        %v509 = vld [vmem:[%s383] sm:$0xff]
        %s510 = scalar_lea.vmem [#allocation8], 64
        %v511 = vld [vmem:[%s510] sm:$0xff]
        %v512 = vld [vmem:[%s510 + $0x8] sm:$0xff]
        %v513 = vld [vmem:[%s510 + $0x10] sm:$0xff]
        %v514 = vld [vmem:[%s510 + $0x18] sm:$0xff]
        %s515 = scalar_lea.vmem %s4, 2
        %v516 = vld [vmem:[%s515] sm:$0x1]
        %v518 = vperm.slane %v516, 0
        %v521 = vsel %vm451, %v509, 0
        %523 = vmatpush.msra.mxu0 0.0
        %524 = vmatpush.msra.mxu0 0.0
        %525 = vmatpush.msra.mxu0 0.0
        %526 = vmatpush.msra.mxu0 0.0
        %527 = vmatpush.msra.mxu0 0.0
        %528 = vmatpush.msra.mxu0 0.0
        %529 = vmatpush.msra.mxu0 0.0
        %530 = vmatpush.msra.mxu0 0.0
        %531 = vmatpush.msra.mxu0 0.0
        %532 = vmatpush.msra.mxu0 0.0
        %533 = vmatpush.msra.mxu0 0.0
        %534 = vmatpush.msra.mxu0 0.0
        %535 = vmatpush.msra.mxu0 %v514
        %536 = vmatpush.msra.mxu0 %v513
        %537 = vmatpush.msra.mxu0 %v512
        %538 = vmatpush.msra.mxu0 %v511
        %539 = vmatmul.f32.gmra.mxu0 %v521
        %v540 = vpop.f32.mrf.mxu0
        %v541 = vadd.f32 %v518, %v540
        %542 = vdwg.mxu0
        %vm543 = vcmask 64512
        %v545 = vsel %vm543, %v473, 0
        %v548 = vsel %vm543, %v507, 0
        %550 = vmatpush.xpose.msra.mxu0 0.0
        %551 = vmatpush.xpose.msra.mxu0 0.0
        %552 = vmatpush.xpose.msra.mxu0 0.0
        %553 = vmatpush.xpose.msra.mxu0 0.0
        %554 = vmatpush.xpose.msra.mxu0 0.0
        %555 = vmatpush.xpose.msra.mxu0 0.0
        %556 = vmatpush.xpose.msra.mxu0 0.0
        %557 = vmatpush.xpose.msra.mxu0 0.0
        %558 = vmatpush.xpose.msra.mxu0 0.0
        %559 = vmatpush.xpose.msra.mxu0 0.0
        %560 = vmatpush.xpose.msra.mxu0 0.0
        %561 = vmatpush.xpose.msra.mxu0 0.0
        %562 = vmatpush.xpose.msra.mxu0 0.0
        %563 = vmatpush.xpose.msra.mxu0 0.0
        %564 = vmatpush.xpose.msra.mxu0 0.0
        %565 = vmatpush.xpose.msra.mxu0 %v548
        %566 = vmatmul.f32.gmra.mxu0 %v545
        %v567 = vpop.f32.mrf.mxu0
        %v568 = vadd.f32 0.0, %v567
        %569 = vdwg.mxu0
        %v570 = vsel %vm543, %v568, -inf
        %571 = vmax.xlane.f32.xlu0 %v570
        %v572 = vpop.xlane.xlu0 %571
        %v573 = vsub.f32 %v568, %v572
        %v574 = vmul.f32 %v573, 1.442695
        %v575 = vpow.pop %v574
        %v576 = vsel %vm543, %v575, 0.0
        %577 = vadd.xlane.f32.xlu0 %v576
        %v578 = vpop.xlane.xlu0 %577
        %v579 = vrcp.pop %v578
        %v580 = vmul.f32 %v578, %v579
        %v581 = vsub.f32 2.0, %v580
        %v582 = vmul.f32 %v579, %v581
        %v583 = vmul.f32 %v575, %v582
        %584 = vst.msk [vmem:[%s441] sm:$0xff] %vm543, %v583
        %v586 = vsel %vm543, %v583, 0
        %588 = vmatpush.msra.mxu0 0.0
        %589 = vmatpush.msra.mxu0 0.0
        %590 = vmatpush.msra.mxu0 0.0
        %591 = vmatpush.msra.mxu0 0.0
        %592 = vmatpush.msra.mxu0 0.0
        %593 = vmatpush.msra.mxu0 0.0
        %594 = vmatpush.msra.mxu0 0.0
        %595 = vmatpush.msra.mxu0 0.0
        %596 = vmatpush.msra.mxu0 0.0
        %597 = vmatpush.msra.mxu0 0.0
        %598 = vmatpush.msra.mxu0 0.0
        %599 = vmatpush.msra.mxu0 0.0
        %600 = vmatpush.msra.mxu0 0.0
        %601 = vmatpush.msra.mxu0 0.0
        %602 = vmatpush.msra.mxu0 0.0
        %603 = vmatpush.msra.mxu0 %v541
        %604 = vmatmul.f32.gmra.mxu0 %v586
        %v605 = vpop.f32.mrf.mxu0
        %v606 = vadd.f32 0.0, %v605
        %607 = vdwg.mxu0
        %608 = vrot.lane.b32.xlu0 %v473, 120
        %v609 = vpop.permute.xlu0 %608
        %610 = vrot.lane.b32.xlu0 %v507, 120
        %v611 = vpop.permute.xlu0 %610
        %v612 = vsel %vm543, %v609, 0
        %v614 = vsel %vm543, %v611, 0
        %616 = vmatpush.xpose.msra.mxu0 0.0
        %617 = vmatpush.xpose.msra.mxu0 0.0
        %618 = vmatpush.xpose.msra.mxu0 0.0
        %619 = vmatpush.xpose.msra.mxu0 0.0
        %620 = vmatpush.xpose.msra.mxu0 0.0
        %621 = vmatpush.xpose.msra.mxu0 0.0
        %622 = vmatpush.xpose.msra.mxu0 0.0
        %623 = vmatpush.xpose.msra.mxu0 0.0
        %624 = vmatpush.xpose.msra.mxu0 0.0
        %625 = vmatpush.xpose.msra.mxu0 0.0
        %626 = vmatpush.xpose.msra.mxu0 0.0
        %627 = vmatpush.xpose.msra.mxu0 0.0
        %628 = vmatpush.xpose.msra.mxu0 0.0
        %629 = vmatpush.xpose.msra.mxu0 0.0
        %630 = vmatpush.xpose.msra.mxu0 0.0
        %631 = vmatpush.xpose.msra.mxu0 %v614
        %632 = vmatmul.f32.gmra.mxu0 %v612
        %v633 = vpop.f32.mrf.mxu0
        %v634 = vadd.f32 0.0, %v633
        %635 = vdwg.mxu0
        %v636 = vsel %vm543, %v634, -inf
        %637 = vmax.xlane.f32.xlu0 %v636
        %v638 = vpop.xlane.xlu0 %637
        %v639 = vsub.f32 %v634, %v638
        %v640 = vmul.f32 %v639, 1.442695
        %v641 = vpow.pop %v640
        %v642 = vsel %vm543, %v641, 0.0
        %643 = vadd.xlane.f32.xlu0 %v642
        %v644 = vpop.xlane.xlu0 %643
        %v645 = vrcp.pop %v644
        %v646 = vmul.f32 %v644, %v645
        %v647 = vsub.f32 2.0, %v646
        %v648 = vmul.f32 %v645, %v647
        %v649 = vmul.f32 %v641, %v648
        %s650 = scalar_lea.vmem %s441, 8 [#allocation12]
        %651 = vst.msk [vmem:[%s650] sm:$0xff] %vm543, %v649
        %653 = vrot.lane.b32.xlu0 %v541, 120
        %v654 = vpop.permute.xlu0 %653
        %v657 = vsel %vm543, %v649, 0
        %659 = vmatpush.msra.mxu0 0.0
        %660 = vmatpush.msra.mxu0 0.0
        %661 = vmatpush.msra.mxu0 0.0
        %662 = vmatpush.msra.mxu0 0.0
        %663 = vmatpush.msra.mxu0 0.0
        %664 = vmatpush.msra.mxu0 0.0
        %665 = vmatpush.msra.mxu0 0.0
        %666 = vmatpush.msra.mxu0 0.0
        %667 = vmatpush.msra.mxu0 0.0
        %668 = vmatpush.msra.mxu0 0.0
        %669 = vmatpush.msra.mxu0 0.0
        %670 = vmatpush.msra.mxu0 0.0
        %671 = vmatpush.msra.mxu0 0.0
        %672 = vmatpush.msra.mxu0 0.0
        %673 = vmatpush.msra.mxu0 0.0
        %674 = vmatpush.msra.mxu0 %v654
        %675 = vmatmul.f32.gmra.mxu0 %v657
        %v676 = vpop.f32.mrf.mxu0
        %v677 = vadd.f32 0.0, %v676
        %678 = vdwg.mxu0
        %679 = vrot.lane.b32.xlu0 %v473, 112
        %v680 = vpop.permute.xlu0 %679
        %681 = vrot.lane.b32.xlu0 %v507, 112
        %v682 = vpop.permute.xlu0 %681
        %v683 = vsel %vm543, %v680, 0
        %v685 = vsel %vm543, %v682, 0
        %687 = vmatpush.xpose.msra.mxu0 0.0
        %688 = vmatpush.xpose.msra.mxu0 0.0
        %689 = vmatpush.xpose.msra.mxu0 0.0
        %690 = vmatpush.xpose.msra.mxu0 0.0
        %691 = vmatpush.xpose.msra.mxu0 0.0
        %692 = vmatpush.xpose.msra.mxu0 0.0
        %693 = vmatpush.xpose.msra.mxu0 0.0
        %694 = vmatpush.xpose.msra.mxu0 0.0
        %695 = vmatpush.xpose.msra.mxu0 0.0
        %696 = vmatpush.xpose.msra.mxu0 0.0
        %697 = vmatpush.xpose.msra.mxu0 0.0
        %698 = vmatpush.xpose.msra.mxu0 0.0
        %699 = vmatpush.xpose.msra.mxu0 0.0
        %700 = vmatpush.xpose.msra.mxu0 0.0
        %701 = vmatpush.xpose.msra.mxu0 0.0
        %702 = vmatpush.xpose.msra.mxu0 %v685
        %703 = vmatmul.f32.gmra.mxu0 %v683
        %v704 = vpop.f32.mrf.mxu0
        %v705 = vadd.f32 0.0, %v704
        %706 = vdwg.mxu0
        %v707 = vsel %vm543, %v705, -inf
        %708 = vmax.xlane.f32.xlu0 %v707
        %v709 = vpop.xlane.xlu0 %708
        %v710 = vsub.f32 %v705, %v709
        %v711 = vmul.f32 %v710, 1.442695
        %v712 = vpow.pop %v711
        %v713 = vsel %vm543, %v712, 0.0
        %714 = vadd.xlane.f32.xlu0 %v713
        %v715 = vpop.xlane.xlu0 %714
        %v716 = vrcp.pop %v715
        %v717 = vmul.f32 %v715, %v716
        %v718 = vsub.f32 2.0, %v717
        %v719 = vmul.f32 %v716, %v718
        %v720 = vmul.f32 %v712, %v719
        %s721 = scalar_lea.vmem %s441, 16 [#allocation12]
        %722 = vst.msk [vmem:[%s721] sm:$0xff] %vm543, %v720
        %723 = vrot.lane.b32.xlu0 %v541, 112
        %v724 = vpop.permute.xlu0 %723
        %v727 = vsel %vm543, %v720, 0
        %729 = vmatpush.msra.mxu0 0.0
        %730 = vmatpush.msra.mxu0 0.0
        %731 = vmatpush.msra.mxu0 0.0
        %732 = vmatpush.msra.mxu0 0.0
        %733 = vmatpush.msra.mxu0 0.0
        %734 = vmatpush.msra.mxu0 0.0
        %735 = vmatpush.msra.mxu0 0.0
        %736 = vmatpush.msra.mxu0 0.0
        %737 = vmatpush.msra.mxu0 0.0
        %738 = vmatpush.msra.mxu0 0.0
        %739 = vmatpush.msra.mxu0 0.0
        %740 = vmatpush.msra.mxu0 0.0
        %741 = vmatpush.msra.mxu0 0.0
        %742 = vmatpush.msra.mxu0 0.0
        %743 = vmatpush.msra.mxu0 0.0
        %744 = vmatpush.msra.mxu0 %v724
        %745 = vmatmul.f32.gmra.mxu0 %v727
        %v746 = vpop.f32.mrf.mxu0
        %v747 = vadd.f32 0.0, %v746
        %748 = vdwg.mxu0
        %749 = vrot.lane.b32.xlu0 %v473, 104
        %v750 = vpop.permute.xlu0 %749
        %751 = vrot.lane.b32.xlu0 %v507, 104
        %v752 = vpop.permute.xlu0 %751
        %v753 = vsel %vm543, %v750, 0
        %v755 = vsel %vm543, %v752, 0
        %757 = vmatpush.xpose.msra.mxu0 0.0
        %758 = vmatpush.xpose.msra.mxu0 0.0
        %759 = vmatpush.xpose.msra.mxu0 0.0
        %760 = vmatpush.xpose.msra.mxu0 0.0
        %761 = vmatpush.xpose.msra.mxu0 0.0
        %762 = vmatpush.xpose.msra.mxu0 0.0
        %763 = vmatpush.xpose.msra.mxu0 0.0
        %764 = vmatpush.xpose.msra.mxu0 0.0
        %765 = vmatpush.xpose.msra.mxu0 0.0
        %766 = vmatpush.xpose.msra.mxu0 0.0
        %767 = vmatpush.xpose.msra.mxu0 0.0
        %768 = vmatpush.xpose.msra.mxu0 0.0
        %769 = vmatpush.xpose.msra.mxu0 0.0
        %770 = vmatpush.xpose.msra.mxu0 0.0
        %771 = vmatpush.xpose.msra.mxu0 0.0
        %772 = vmatpush.xpose.msra.mxu0 %v755
        %773 = vmatmul.f32.gmra.mxu0 %v753
        %v774 = vpop.f32.mrf.mxu0
        %v775 = vadd.f32 0.0, %v774
        %776 = vdwg.mxu0
        %v777 = vsel %vm543, %v775, -inf
        %778 = vmax.xlane.f32.xlu0 %v777
        %v779 = vpop.xlane.xlu0 %778
        %v780 = vsub.f32 %v775, %v779
        %v781 = vmul.f32 %v780, 1.442695
        %v782 = vpow.pop %v781
        %v783 = vsel %vm543, %v782, 0.0
        %784 = vadd.xlane.f32.xlu0 %v783
        %v785 = vpop.xlane.xlu0 %784
        %v786 = vrcp.pop %v785
        %v787 = vmul.f32 %v785, %v786
        %v788 = vsub.f32 2.0, %v787
        %v789 = vmul.f32 %v786, %v788
        %v790 = vmul.f32 %v782, %v789
        %s791 = scalar_lea.vmem %s441, 24 [#allocation12]
        %792 = vst.msk [vmem:[%s791] sm:$0xff] %vm543, %v790
        %793 = vrot.lane.b32.xlu0 %v541, 104
        %v794 = vpop.permute.xlu0 %793
        %v797 = vsel %vm543, %v790, 0
        %799 = vmatpush.msra.mxu0 0.0
        %800 = vmatpush.msra.mxu0 0.0
        %801 = vmatpush.msra.mxu0 0.0
        %802 = vmatpush.msra.mxu0 0.0
        %803 = vmatpush.msra.mxu0 0.0
        %804 = vmatpush.msra.mxu0 0.0
        %805 = vmatpush.msra.mxu0 0.0
        %806 = vmatpush.msra.mxu0 0.0
        %807 = vmatpush.msra.mxu0 0.0
        %808 = vmatpush.msra.mxu0 0.0
        %809 = vmatpush.msra.mxu0 0.0
        %810 = vmatpush.msra.mxu0 0.0
        %811 = vmatpush.msra.mxu0 0.0
        %812 = vmatpush.msra.mxu0 0.0
        %813 = vmatpush.msra.mxu0 0.0
        %814 = vmatpush.msra.mxu0 %v794
        %815 = vmatmul.f32.gmra.mxu0 %v797
        %v816 = vpop.f32.mrf.mxu0
        %v817 = vadd.f32 0.0, %v816
        %818 = vdwg.mxu0
        %820 = vrot.lane.b32.xlu0 %v677, 8
        %v821 = vpop.permute.xlu0 %820
        %824 = vrot.lane.b32.xlu0 %v747, 16
        %v825 = vpop.permute.xlu0 %824
        %828 = vrot.lane.b32.xlu0 %v817, 24
        %v829 = vpop.permute.xlu0 %828
        %v831 = vsel %vm543, %v606, %v821
        %vm832 = vcmask 130048
        %v833 = vsel %vm832, %v831, %v825
        %vm834 = vcmask 195584
        %v835 = vsel %vm834, %v833, %v829
        %v836 = vld [vmem:[#allocation10] sm:$0xff]
        %v837 = vld [vmem:[#allocation10 + $0x8] sm:$0xff]
        %v838 = vld [vmem:[#allocation10 + $0x10] sm:$0xff]
        %v839 = vld [vmem:[#allocation10 + $0x18] sm:$0xff]
        %v840 = vld [vmem:[%s6] sm:$0x1]
        %v842 = vperm.slane %v840, 0
        %v845 = vsel %vm451, %v835, 0
        %847 = vmatpush.msra.mxu0 0.0
        %848 = vmatpush.msra.mxu0 0.0
        %849 = vmatpush.msra.mxu0 0.0
        %850 = vmatpush.msra.mxu0 0.0
        %851 = vmatpush.msra.mxu0 0.0
        %852 = vmatpush.msra.mxu0 0.0
        %853 = vmatpush.msra.mxu0 0.0
        %854 = vmatpush.msra.mxu0 0.0
        %855 = vmatpush.msra.mxu0 0.0
        %856 = vmatpush.msra.mxu0 0.0
        %857 = vmatpush.msra.mxu0 0.0
        %858 = vmatpush.msra.mxu0 0.0
        %859 = vmatpush.msra.mxu0 %v839
        %860 = vmatpush.msra.mxu0 %v838
        %861 = vmatpush.msra.mxu0 %v837
        %862 = vmatpush.msra.mxu0 %v836
        %863 = vmatmul.f32.gmra.mxu0 %v845
        %v864 = vpop.f32.mrf.mxu0
        %v865 = vadd.f32 %v842, %v864
        %866 = vdwg.mxu0
        %867 = vst.msk [vmem:[%s434] sm:$0xff] %vm451, %v865
        %s868 = sand.u32 %s203, 1
        %s869 = scalar_lea.sflag [#allocation4], %s868
        %s870 = sand.u32 %s203, 1
        %s871 = smul.addr %s870, 8
        %s872 = scalar_lea.vmem [#allocation11], %s871
        %s873 = sand.u32 %s229, 1
        %s874 = scalar_lea.sflag [#allocation13], %s873
        %s875 = sand.u32 %s229, 1
        %s876 = smul.addr %s875, 32
        %s877 = scalar_lea.vmem [#allocation12], %s876
        // Predicated region
        $region69: #{tpu_custom_call.1} parent=47 // pred_check
          %p878 = pneg %p213
        $region70: #{tpu_custom_call.1} parent=47 // pred_check_branch
          %880 = sbr.rel (%p878) target = $region72
        $region71: #{tpu_custom_call.1} parent=47 // pred_region
          %882 = vsyncadd %s869, 0
          %s883 = smul.addr %s33, 8
          %s884 = scalar_lea.hbm %s7, %s883
          %s886 = sshll.u32 %s872, 4
          %s887 = int_to_ptr.vmem [resolvable:$true] %s886
          %s888 = sshll.u32 %s884, 4
          %s889 = int_to_ptr.hbm [resolvable:$true] %s888
          %891 = dma.vmem_to_hbm [thread:$0]  %s887, 128, %s889, %s869
        $region72: #{tpu_custom_call.1} parent=47 // pred_fallthru
          _
        // Predicated region
        $region73: #{tpu_custom_call.1} parent=47 // pred_check
          %p892 = pneg %p239
        $region74: #{tpu_custom_call.1} parent=47 // pred_check_branch
          %894 = sbr.rel (%p892) target = $region76
        $region75: #{tpu_custom_call.1} parent=47 // pred_region
          %896 = vsyncadd %s874, 0
          %s897 = smul.addr %s33, 4
          %s898 = smul.addr %s897, 8
          %s899 = scalar_lea.hbm %s8, %s898
          %s900 = sshll.u32 %s877, 4
          %s901 = int_to_ptr.vmem [resolvable:$true] %s900
          %s902 = sshll.u32 %s899, 4
          %s903 = int_to_ptr.hbm [resolvable:$true] %s902
          %908 = dma.vmem_to_hbm [thread:$0]  %s901, 512, %s903, %s874, 128, 128, 8
        $region76: #{tpu_custom_call.1} parent=47 // pred_fallthru
          _
      $region48: #{tpu_custom_call.1} parent=5 // pred_fallthru
        _
      %p909 = scmp.le.s32.totalorder 2, %s28
      // Predicated region
      $region77: #{tpu_custom_call.1} parent=5 // pred_check
        %p910 = pneg %p909
      $region78: #{tpu_custom_call.1} parent=5 // pred_check_branch
        %912 = sbr.rel (%p910) target = $region80
      $region79: #{tpu_custom_call.1} parent=5 // pred_region
        %s913 = ssub.s32 %s28, 2
        // Predicated region
        $region81: #{tpu_custom_call.1} parent=79 // pred_check
          %p914 = pneg %p219
        $region82: #{tpu_custom_call.1} parent=79 // pred_check_branch
          %916 = sbr.rel (%p914) target = $region84
        $region83: #{tpu_custom_call.1} parent=79 // pred_region
          %s917 = sand.u32 %s204, 1
          %s918 = scalar_lea.sflag [#allocation4], %s917
          %s919 = sand.u32 %s204, 1
          %s920 = smul.addr %s919, 8
          %s921 = scalar_lea.vmem [#allocation11], %s920
          %923 = dma.done %s918, 128
        $region84: #{tpu_custom_call.1} parent=79 // pred_fallthru
          _
        // Predicated region
        $region85: #{tpu_custom_call.1} parent=79 // pred_check
          %p924 = pneg %p245
        $region86: #{tpu_custom_call.1} parent=79 // pred_check_branch
          %926 = sbr.rel (%p924) target = $region88
        $region87: #{tpu_custom_call.1} parent=79 // pred_region
          %s927 = sand.u32 %s230, 1
          %s928 = scalar_lea.sflag [#allocation13], %s927
          %s929 = sand.u32 %s230, 1
          %s930 = smul.addr %s929, 32
          %s931 = scalar_lea.vmem [#allocation12], %s930
          %933 = dma.done %s928, 512
        $region88: #{tpu_custom_call.1} parent=79 // pred_fallthru
          _
      $region80: #{tpu_custom_call.1} parent=5 // pred_fallthru
        _
    $region6: #{tpu_custom_call.1} parent=1 // loop_footer
      %s32 = sadd.s32 1, %s28
    $region7: #{tpu_custom_call.1} parent=1 // loop_footer_branch
      %27 = sbr.rel target = $region3
    $region8: #{tpu_custom_call.1} parent=1 // loop_exit
      _
    %934 = vsyncpa [#allocation3], 1
    %s935 = scalar_lea.sflag [#allocation3], 1
    %936 = vsyncpa %s935, 1
    %937 = vsyncpa [#allocation6], 1
    %s938 = scalar_lea.sflag [#allocation6], 1
    %939 = vsyncpa %s938, 1
    %940 = vsyncpa [#allocation9], 1
    %941 = vsyncpa [#allocation4], 1
    %s942 = scalar_lea.sflag [#allocation4], 1
    %943 = vsyncpa %s942, 1
    %944 = vsyncpa [#allocation13], 1
    %s945 = scalar_lea.sflag [#allocation13], 1
    %946 = vsyncpa %s945, 1

</llo_original>
